<compile_context>
chip_gen: v6e
topology: v6e:2x2x1
jax: 0.10.0
libtpu: 0.0.40
codegen_flags: <defaults>
</compile_context>

<pallas_src>
import jax
import jax.numpy as jnp
from jax import lax
from jax.experimental import pallas as pl
from jax.experimental.pallas import tpu as pltpu

_LANE = 128      # batch-tile granularity (lane width)
_MAX_BM = 1024   # cap keeps f32 double-buffered tiles inside v5e's 16 MiB scoped VMEM


def _leaky_relu(x, slope=0.2):
    return jnp.where(x > 0, x, slope * x)


def _round_up(x, m):
    return ((x + m - 1) // m) * m


def _choose_bm(B):
    """Batch-tile policy: small batches get one small tile; medium batches are
    split into (at least) two grid steps so v7x's two TensorCores both get
    work; large batches use 1024-row tiles to amortize per-grid-step overhead."""
    b = _round_up(max(B, 1), _LANE)
    if b <= _LANE:
        return _LANE
    if b <= 2 * _MAX_BM:
        return min(_MAX_BM, _round_up(-(-b // 2), _LANE))   # >= 2 grid steps
    return _MAX_BM


def mlp_kernel(x_ref,
               w1_ref, b1_ref,
               w2_ref, b2_ref,
               w3_ref, b3_ref,
               w4t_ref, b4_ref,
               o_ref):
    # Dot operands may be f32 or bf16 (prepare_params decides); accumulation is
    # f32 on the MXU, bias add + LeakyReLU stay f32 on the VPU.
    cdt = w2_ref.dtype

    # Layer 1: [bm, D] @ [D, 256] + [1, 256]   (K=10 left unpadded: <1% of FLOPs)
    h = jnp.dot(x_ref[...], w1_ref[...],
                preferred_element_type=jnp.float32) + b1_ref[...]
    h = _leaky_relu(h)
    # Dropout(0.3) -> identity in eval-mode forward.

    # Layer 2: [bm, 256] @ [256, 512] + [1, 512]
    h = jnp.dot(h.astype(cdt), w2_ref[...],
                preferred_element_type=jnp.float32) + b2_ref[...]
    h = _leaky_relu(h)
    # Dropout(0.3) -> identity in eval-mode forward.

    # Layer 3: [bm, 512] @ [512, 256] + [1, 256]
    h = jnp.dot(h.astype(cdt), w3_ref[...],
                preferred_element_type=jnp.float32) + b3_ref[...]
    h = _leaky_relu(h)

    # Layer 4, transposed: [1, 256] x [bm, 256]^T -> [1, bm].
    # Batch lands on the lane axis, so the output store is lane-dense with no
    # padded columns and only 2*256*bm FLOPs (no dead output columns).
    y = lax.dot_general(w4t_ref[...], h.astype(cdt),
                        dimension_numbers=(((1,), (1,)), ((), ())),
                        preferred_element_type=jnp.float32)
    o_ref[...] = y + b4_ref[...]


def prepare_params(params, compute_dtype=jnp.float32):
    """One-time parameter prep (hoisted out of the forward path):
    casts matmul operands to `compute_dtype` (bf16 recommended on v5e/v6e/v7x:
    the MXU is natively bf16 on all of them), keeps biases f32, and transposes
    the final [256, 1] weight to [1, 256] for the lane-dense output layer."""
    cdt = jnp.dtype(compute_dtype)
    return {
        "w1": params["w1"].astype(cdt), "b1": params["b1"].astype(jnp.float32),
        "w2": params["w2"].astype(cdt), "b2": params["b2"].astype(jnp.float32),
        "w3": params["w3"].astype(cdt), "b3": params["b3"].astype(jnp.float32),
        "w4t": params["w4"].T.astype(cdt),                 # [1, 256]
        "b4": params["b4"].reshape(1, 1).astype(jnp.float32),
    }


def physics_discriminator(x, prepared, *, bm=None):
    """Fused forward pass.  x: [B, input_dim] f32.  prepared: prepare_params()
    output.  Returns [B, 1] f32."""
    B, D = x.shape
    cdt = prepared["w1"].dtype
    if bm is None:
        bm = _choose_bm(B)

    # Pad the batch up to a multiple of the tile (pad rows are discarded).
    B_pad = _round_up(max(B, 1), bm)
    if B_pad != B:
        x = jnp.pad(x, ((0, B_pad - B), (0, 0)))
    x = x.astype(cdt)

    w1, b1 = prepared["w1"], prepared["b1"]
    w2, b2 = prepared["w2"], prepared["b2"]
    w3, b3 = prepared["w3"], prepared["b3"]
    w4t, b4 = prepared["w4t"], prepared["b4"]

    grid = (B_pad // bm,)
    # Grid-invariant constant index_map -> weights DMA'd once and stay resident.
    full = lambda a: pl.BlockSpec(a.shape, lambda i: (0, 0))

    itemsize = lambda a: a.size * a.dtype.itemsize
    flops = 2 * B_pad * (D * 256 + 256 * 512 + 512 * 256 + 256 * 1)
    bytes_accessed = (itemsize(x)
                      + sum(itemsize(a) for a in (w1, b1, w2, b2, w3, b3, w4t, b4))
                      + B_pad * 4)

    out = pl.pallas_call(
        mlp_kernel,
        out_shape=jax.ShapeDtypeStruct((1, B_pad), jnp.float32),
        grid_spec=pltpu.PrefetchScalarGridSpec(
            num_scalar_prefetch=0,
            grid=grid,
            in_specs=[
                pl.BlockSpec((bm, D), lambda i: (i, 0)),     # x tile
                full(w1), full(b1),
                full(w2), full(b2),
                full(w3), full(b3),
                full(w4t), full(b4),
            ],
            # Single output row, batch on lanes; each grid step writes its own
            # bm-wide lane block -> unmasked, lane-dense vst.
            out_specs=pl.BlockSpec((1, bm), lambda i: (0, i)),
        ),
        compiler_params=pltpu.CompilerParams(
            dimension_semantics=("parallel",)),
        cost_estimate=pl.CostEstimate(
            flops=flops, transcendentals=0, bytes_accessed=bytes_accessed),
    )(x, w1, b1, w2, b2, w3, b3, w4t, b4)

    return out[0, :B].reshape(B, 1)


def init_params(key, input_dim=10):
    """Deterministic init mimicking PyTorch nn.Linear default:
    U(-1/sqrt(fan_in), 1/sqrt(fan_in)) for both weight and bias."""
    dims = [(input_dim, 256), (256, 512), (512, 256), (256, 1)]
    params = {}
    for li, (fan_in, fan_out) in enumerate(dims, start=1):
        key, kw, kb = jax.random.split(key, 3)
        bound = 1.0 / (fan_in ** 0.5)
        params[f"w{li}"] = jax.random.uniform(
            kw, (fan_in, fan_out), jnp.float32, -bound, bound)
        params[f"b{li}"] = jax.random.uniform(
            kb, (1, fan_out), jnp.float32, -bound, bound)
    return params


def reference_forward(x, params):
    h = _leaky_relu(x @ params["w1"] + params["b1"])
    h = _leaky_relu(h @ params["w2"] + params["b2"])
    h = _leaky_relu(h @ params["w3"] + params["b3"])
    return h @ params["w4"] + params["b4"]


if __name__ == "__main__":
    key = jax.random.PRNGKey(0)
    key, kx = jax.random.split(key)

    B, INPUT_DIM = 16, 10
    x = jax.random.normal(kx, (B, INPUT_DIM), jnp.float32)
    params = init_params(key, input_dim=INPUT_DIM)
    ref = reference_forward(x, params)

    # f32 path (matches PyTorch semantics). Tolerance loosened to 2e-4 since
    # TPU "f32" matmul is emulated via multi-pass bf16 on the MXU.
    p_f32 = prepare_params(params, jnp.float32)
    out = jax.block_until_ready(physics_discriminator(x, p_f32))
    assert out.shape == (B, 1)
    assert jnp.allclose(out, ref, atol=2e-4, rtol=2e-4), "f32 mismatch vs reference"

    # Multi-tile path (grid > 1, exercises padding + lane-blocked output).
    key, kx2 = jax.random.split(key)
    B2 = 300
    x2 = jax.random.normal(kx2, (B2, INPUT_DIM), jnp.float32)
    ref2 = reference_forward(x2, params)
    out2 = jax.block_until_ready(physics_discriminator(x2, p_f32))
    assert out2.shape == (B2, 1)
    assert jnp.allclose(out2, ref2, atol=2e-4, rtol=2e-4), "tiled f32 mismatch"

    # bf16 dot-operand fast path (recommended on v5e/v6e/v7x): loose-tolerance
    # check against the f32 reference.
    p_bf16 = prepare_params(params, jnp.bfloat16)
    out_bf = jax.block_until_ready(physics_discriminator(x, p_bf16))
    assert out_bf.shape == (B, 1)
    assert jnp.allclose(out_bf, ref, atol=5e-2, rtol=5e-2), "bf16 mismatch vs reference"

    print("KERNEL_OK")
</pallas_src>

<mosaic_0001>
module attributes {stable_mosaic.version = 11 : i64} {
  func.func @mlp_kernel(%arg0: i32, %arg1: memref<128x10xf32, #tpu.memory_space<vmem>>, %arg2: memref<10x256xf32, #tpu.memory_space<vmem>>, %arg3: memref<1x256xf32, #tpu.memory_space<vmem>>, %arg4: memref<256x512xf32, #tpu.memory_space<vmem>>, %arg5: memref<1x512xf32, #tpu.memory_space<vmem>>, %arg6: memref<512x256xf32, #tpu.memory_space<vmem>>, %arg7: memref<1x256xf32, #tpu.memory_space<vmem>>, %arg8: memref<1x256xf32, #tpu.memory_space<vmem>>, %arg9: memref<1x1xf32, #tpu.memory_space<vmem>>, %arg10: memref<1x128xf32, #tpu.memory_space<vmem>>) attributes {dimension_semantics = [#tpu.dimension_semantics<parallel>], iteration_bounds = array<i64: 1>, scalar_prefetch = 0 : i64, scratch_operands = 0 : i64, tpu.core_type = #tpu.core_type<tc>, window_params = [{transform_indices = @transform_0, window_bounds = array<i64: 128, 10>}, {pipeline_mode = #tpu.pipeline_mode<synchronous>, transform_indices = @transform_1, window_bounds = array<i64: 10, 256>}, {pipeline_mode = #tpu.pipeline_mode<synchronous>, transform_indices = @transform_2, window_bounds = array<i64: 1, 256>}, {pipeline_mode = #tpu.pipeline_mode<synchronous>, transform_indices = @transform_3, window_bounds = array<i64: 256, 512>}, {pipeline_mode = #tpu.pipeline_mode<synchronous>, transform_indices = @transform_4, window_bounds = array<i64: 1, 512>}, {pipeline_mode = #tpu.pipeline_mode<synchronous>, transform_indices = @transform_5, window_bounds = array<i64: 512, 256>}, {pipeline_mode = #tpu.pipeline_mode<synchronous>, transform_indices = @transform_6, window_bounds = array<i64: 1, 256>}, {pipeline_mode = #tpu.pipeline_mode<synchronous>, transform_indices = @transform_7, window_bounds = array<i64: 1, 256>}, {pipeline_mode = #tpu.pipeline_mode<synchronous>, transform_indices = @transform_8, window_bounds = array<i64: 1, 1>}, {transform_indices = @transform_9, window_bounds = array<i64: 1, 128>}]} {
    %c0 = arith.constant 0 : index
    %c0_0 = arith.constant 0 : index
    %0 = vector.load %arg1[%c0, %c0_0] : memref<128x10xf32, #tpu.memory_space<vmem>>, vector<128x10xf32>
    %c0_1 = arith.constant 0 : index
    %c0_2 = arith.constant 0 : index
    %1 = vector.load %arg2[%c0_1, %c0_2] : memref<10x256xf32, #tpu.memory_space<vmem>>, vector<10x256xf32>
    %cst = arith.constant dense<0.000000e+00> : vector<128x256xf32>
    %2 = tpu.matmul %0, %1, %cst {dimension_numbers = #tpu.dot_dimension_numbers<[1], [0], [0], [1], [0, 0, 1, 1], [], []>} : vector<128x10xf32>, vector<10x256xf32>, vector<128x256xf32> -> vector<128x256xf32>
    %c0_3 = arith.constant 0 : index
    %c0_4 = arith.constant 0 : index
    %3 = vector.load %arg3[%c0_3, %c0_4] : memref<1x256xf32, #tpu.memory_space<vmem>>, vector<1x256xf32>
    %4 = vector.broadcast %3 : vector<1x256xf32> to vector<128x256xf32>
    %5 = arith.addf %2, %4 : vector<128x256xf32>
    %cst_5 = arith.constant 0.000000e+00 : f32
    %6 = vector.broadcast %cst_5 : f32 to vector<128x256xf32>
    %7 = arith.cmpf ogt, %5, %6 : vector<128x256xf32>
    %cst_6 = arith.constant 2.000000e-01 : f32
    %8 = vector.broadcast %cst_6 : f32 to vector<128x256xf32>
    %9 = arith.mulf %8, %5 : vector<128x256xf32>
    %10 = arith.select %7, %5, %9 : vector<128x256xi1>, vector<128x256xf32>
    %c0_7 = arith.constant 0 : index
    %c0_8 = arith.constant 0 : index
    %11 = vector.load %arg4[%c0_7, %c0_8] : memref<256x512xf32, #tpu.memory_space<vmem>>, vector<256x512xf32>
    %cst_9 = arith.constant dense<0.000000e+00> : vector<128x512xf32>
    %12 = tpu.matmul %10, %11, %cst_9 {dimension_numbers = #tpu.dot_dimension_numbers<[1], [0], [0], [1], [0, 0, 1, 1], [], []>} : vector<128x256xf32>, vector<256x512xf32>, vector<128x512xf32> -> vector<128x512xf32>
    %c0_10 = arith.constant 0 : index
    %c0_11 = arith.constant 0 : index
    %13 = vector.load %arg5[%c0_10, %c0_11] : memref<1x512xf32, #tpu.memory_space<vmem>>, vector<1x512xf32>
    %14 = vector.broadcast %13 : vector<1x512xf32> to vector<128x512xf32>
    %15 = arith.addf %12, %14 : vector<128x512xf32>
    %cst_12 = arith.constant 0.000000e+00 : f32
    %16 = vector.broadcast %cst_12 : f32 to vector<128x512xf32>
    %17 = arith.cmpf ogt, %15, %16 : vector<128x512xf32>
    %cst_13 = arith.constant 2.000000e-01 : f32
    %18 = vector.broadcast %cst_13 : f32 to vector<128x512xf32>
    %19 = arith.mulf %18, %15 : vector<128x512xf32>
    %20 = arith.select %17, %15, %19 : vector<128x512xi1>, vector<128x512xf32>
    %c0_14 = arith.constant 0 : index
    %c0_15 = arith.constant 0 : index
    %21 = vector.load %arg6[%c0_14, %c0_15] : memref<512x256xf32, #tpu.memory_space<vmem>>, vector<512x256xf32>
    %cst_16 = arith.constant dense<0.000000e+00> : vector<128x256xf32>
    %22 = tpu.matmul %20, %21, %cst_16 {dimension_numbers = #tpu.dot_dimension_numbers<[1], [0], [0], [1], [0, 0, 1, 1], [], []>} : vector<128x512xf32>, vector<512x256xf32>, vector<128x256xf32> -> vector<128x256xf32>
    %c0_17 = arith.constant 0 : index
    %c0_18 = arith.constant 0 : index
    %23 = vector.load %arg7[%c0_17, %c0_18] : memref<1x256xf32, #tpu.memory_space<vmem>>, vector<1x256xf32>
    %24 = vector.broadcast %23 : vector<1x256xf32> to vector<128x256xf32>
    %25 = arith.addf %22, %24 : vector<128x256xf32>
    %cst_19 = arith.constant 0.000000e+00 : f32
    %26 = vector.broadcast %cst_19 : f32 to vector<128x256xf32>
    %27 = arith.cmpf ogt, %25, %26 : vector<128x256xf32>
    %cst_20 = arith.constant 2.000000e-01 : f32
    %28 = vector.broadcast %cst_20 : f32 to vector<128x256xf32>
    %29 = arith.mulf %28, %25 : vector<128x256xf32>
    %30 = arith.select %27, %25, %29 : vector<128x256xi1>, vector<128x256xf32>
    %c0_21 = arith.constant 0 : index
    %c0_22 = arith.constant 0 : index
    %31 = vector.load %arg8[%c0_21, %c0_22] : memref<1x256xf32, #tpu.memory_space<vmem>>, vector<1x256xf32>
    %cst_23 = arith.constant dense<0.000000e+00> : vector<1x128xf32>
    %32 = tpu.matmul %31, %30, %cst_23 {dimension_numbers = #tpu.dot_dimension_numbers<[1], [1], [0], [0], [0, 0, 1, 0], [], []>} : vector<1x256xf32>, vector<128x256xf32>, vector<1x128xf32> -> vector<1x128xf32>
    %c0_24 = arith.constant 0 : index
    %c0_25 = arith.constant 0 : index
    %33 = vector.load %arg9[%c0_24, %c0_25] : memref<1x1xf32, #tpu.memory_space<vmem>>, vector<1x1xf32>
    %34 = vector.broadcast %33 : vector<1x1xf32> to vector<1x128xf32>
    %35 = arith.addf %32, %34 : vector<1x128xf32>
    %c0_26 = arith.constant 0 : index
    %c0_27 = arith.constant 0 : index
    %36 = vector.load %arg10[%c0_26, %c0_27] : memref<1x128xf32, #tpu.memory_space<vmem>>, vector<1x128xf32>
    tpu.vector_store %arg10[%c0_26, %c0_27], %35 {strides = array<i32>} : memref<1x128xf32, #tpu.memory_space<vmem>>, vector<1x128xf32>,
    return
  }
  func.func @transform_0(%arg0: i32) -> (i32, i32) {
    %c0_i32 = arith.constant 0 : i32
    %c0_i32_0 = arith.constant 0 : i32
    return %arg0, %c0_i32 : i32, i32
  }
  func.func @transform_1(%arg0: i32) -> (i32, i32) {
    %c0_i32 = arith.constant 0 : i32
    %c0_i32_0 = arith.constant 0 : i32
    %c0_i32_1 = arith.constant 0 : i32
    return %c0_i32, %c0_i32_0 : i32, i32
  }
  func.func @transform_2(%arg0: i32) -> (i32, i32) {
    %c0_i32 = arith.constant 0 : i32
    %c0_i32_0 = arith.constant 0 : i32
    %c0_i32_1 = arith.constant 0 : i32
    return %c0_i32, %c0_i32_0 : i32, i32
  }
  func.func @transform_3(%arg0: i32) -> (i32, i32) {
    %c0_i32 = arith.constant 0 : i32
    %c0_i32_0 = arith.constant 0 : i32
    %c0_i32_1 = arith.constant 0 : i32
    return %c0_i32, %c0_i32_0 : i32, i32
  }
  func.func @transform_4(%arg0: i32) -> (i32, i32) {
    %c0_i32 = arith.constant 0 : i32
    %c0_i32_0 = arith.constant 0 : i32
    %c0_i32_1 = arith.constant 0 : i32
    return %c0_i32, %c0_i32_0 : i32, i32
  }
  func.func @transform_5(%arg0: i32) -> (i32, i32) {
    %c0_i32 = arith.constant 0 : i32
    %c0_i32_0 = arith.constant 0 : i32
    %c0_i32_1 = arith.constant 0 : i32
    return %c0_i32, %c0_i32_0 : i32, i32
  }
  func.func @transform_6(%arg0: i32) -> (i32, i32) {
    %c0_i32 = arith.constant 0 : i32
    %c0_i32_0 = arith.constant 0 : i32
    %c0_i32_1 = arith.constant 0 : i32
    return %c0_i32, %c0_i32_0 : i32, i32
  }
  func.func @transform_7(%arg0: i32) -> (i32, i32) {
    %c0_i32 = arith.constant 0 : i32
    %c0_i32_0 = arith.constant 0 : i32
    %c0_i32_1 = arith.constant 0 : i32
    return %c0_i32, %c0_i32_0 : i32, i32
  }
  func.func @transform_8(%arg0: i32) -> (i32, i32) {
    %c0_i32 = arith.constant 0 : i32
    %c0_i32_0 = arith.constant 0 : i32
    %c0_i32_1 = arith.constant 0 : i32
    return %c0_i32, %c0_i32_0 : i32, i32
  }
  func.func @transform_9(%arg0: i32) -> (i32, i32) {
    %c0_i32 = arith.constant 0 : i32
    %c0_i32_0 = arith.constant 0 : i32
    return %c0_i32, %arg0 : i32, i32
  }
}

</mosaic_0001>

<llo_original>
// kernel: tpu_custom_call.1
$region0: #{tpu_custom_call.1}
  #allocation0 [shape = 'u32[]', space=smem, size = 0x4, offset = 0x4, fixed_abs, tag = 'smem constant byte address 0x4 - core index']
  #allocation1 [shape = 'u32[144,128]{1,0:T(1,128)}', space=vmem, size = 0x12000, scoped, tag = 'internal scratch']
  #allocation2 [shape = 'f32[1,1]{1,0:T(1,128)S(1)}', space=vmem, size = 0x200, scoped, tag = 'scoped memory for tpu_custom_call.1']
  %s0 = inlined_call_operand.vmem [shape: f32[128,10], index: 0, kind: input, shape index: {}]
  %s1 = inlined_call_operand.vmem [shape: f32[10,256], index: 1, kind: input, shape index: {}]
  %s2 = inlined_call_operand.vmem [shape: f32[1,256], index: 2, kind: input, shape index: {}]
  %s3 = inlined_call_operand.hbm [shape: f32[256,512], index: 3, kind: input, shape index: {}]
  %s4 = inlined_call_operand.vmem [shape: f32[1,512], index: 4, kind: input, shape index: {}]
  %s5 = inlined_call_operand.hbm [shape: f32[512,256], index: 5, kind: input, shape index: {}]
  %s6 = inlined_call_operand.vmem [shape: f32[1,256], index: 6, kind: input, shape index: {}]
  %s7 = inlined_call_operand.vmem [shape: f32[1,256], index: 7, kind: input, shape index: {}]
  %s8 = inlined_call_operand.<no memory space> [shape: f32[1,1], index: 8, kind: input, shape index: {}]
  %s9 = inlined_call_operand.hbm [shape: f32[1,128], index: 9, kind: output, shape index: {}]
  %s10 = sld [smem:[#allocation0]]
  $region54: #{tpu_custom_call.1} parent=0
    _
  %s12 = ssub.s32 1, %s10
  %s13 = scalar_select 0, %s12, %s10
  %v14 = vstv %s8
  %15 = vst [vmem:[#allocation2] sm:$0x1] %v14
  $region1: #{tpu_custom_call.1} parent=0
    #allocation3 [shape = 'u8[524288]{0}', space=vmem, size = 0x80000, scoped, tag = 'input window, operand 3, single buffered']
    #allocation4 [shape = 's32[1]{0}', space=sflag, size = 0x4, scoped, tag = 'scoped memory for tpu_custom_call.1']
    #allocation5 [shape = 's32[1]{0}', space=sflag, size = 0x4, scoped, tag = 'scoped memory for tpu_custom_call.1']
    #allocation6 [shape = 'u8[524288]{0}', space=vmem, size = 0x80000, scoped, tag = 'input window, operand 5, single buffered']
    #allocation7 [shape = 's32[1]{0}', space=sflag, size = 0x4, scoped, tag = 'scoped memory for tpu_custom_call.1']
    #allocation8 [shape = 'u8[512]{0}', space=vmem, size = 0x400, scoped, tag = 'output window, operand 0, single buffered']
    %16 = vsyncpa [#allocation4], 0
    %17 = vsyncpa [#allocation7], 0
    %18 = vsyncpa [#allocation5], 0
    // Predicated region
    $region2: #{tpu_custom_call.1} parent=1 // pred_check
      _
    $region3: #{tpu_custom_call.1} parent=1 // pred_check_branch
      %20 = sbr.rel (0) target = $region5
    $region4: #{tpu_custom_call.1} parent=1 // pred_region
      _
    $region5: #{tpu_custom_call.1} parent=1 // pred_fallthru
      _
    // Predicated region
    $region6: #{tpu_custom_call.1} parent=1 // pred_check
      _
    $region7: #{tpu_custom_call.1} parent=1 // pred_check_branch
      %22 = sbr.rel (0) target = $region9
    $region8: #{tpu_custom_call.1} parent=1 // pred_region
      _
    $region9: #{tpu_custom_call.1} parent=1 // pred_fallthru
      _
    // Predicated region
    $region10: #{tpu_custom_call.1} parent=1 // pred_check
      _
    $region11: #{tpu_custom_call.1} parent=1 // pred_check_branch
      %24 = sbr.rel (0) target = $region13
    $region12: #{tpu_custom_call.1} parent=1 // pred_region
      _
    $region13: #{tpu_custom_call.1} parent=1 // pred_fallthru
      _
    // Predicated region
    $region14: #{tpu_custom_call.1} parent=1 // pred_check
      _
    $region15: #{tpu_custom_call.1} parent=1 // pred_check_branch
      %26 = sbr.rel (0) target = $region17
    $region16: #{tpu_custom_call.1} parent=1 // pred_region
      %s28 = ssub.s32 16384, 16384
      %29 = vsyncadd [#allocation4], %s28
      %s30 = sshll.u32 [#allocation3], 4
      %s31 = int_to_ptr.vmem [resolvable:$true] %s30
      %36 = dma.hbm_to_vmem [thread:$0]  %s3, 16384, %s31, [#allocation4], 512, 512, 32
    $region17: #{tpu_custom_call.1} parent=1 // pred_fallthru
      _
    // Predicated region
    $region18: #{tpu_custom_call.1} parent=1 // pred_check
      _
    $region19: #{tpu_custom_call.1} parent=1 // pred_check_branch
      %38 = sbr.rel (0) target = $region21
    $region20: #{tpu_custom_call.1} parent=1 // pred_region
      _
    $region21: #{tpu_custom_call.1} parent=1 // pred_fallthru
      _
    // Predicated region
    $region22: #{tpu_custom_call.1} parent=1 // pred_check
      _
    $region23: #{tpu_custom_call.1} parent=1 // pred_check_branch
      %40 = sbr.rel (0) target = $region25
    $region24: #{tpu_custom_call.1} parent=1 // pred_region
      %s42 = ssub.s32 16384, 16384
      %43 = vsyncadd [#allocation7], %s42
      %s44 = sshll.u32 [#allocation6], 4
      %s45 = int_to_ptr.vmem [resolvable:$true] %s44
      %50 = dma.hbm_to_vmem [thread:$0]  %s5, 16384, %s45, [#allocation7], 256, 256, 16
    $region25: #{tpu_custom_call.1} parent=1 // pred_fallthru
      _
    // Predicated region
    $region26: #{tpu_custom_call.1} parent=1 // pred_check
      _
    $region27: #{tpu_custom_call.1} parent=1 // pred_check_branch
      %52 = sbr.rel (0) target = $region29
    $region28: #{tpu_custom_call.1} parent=1 // pred_region
      _
    $region29: #{tpu_custom_call.1} parent=1 // pred_fallthru
      _
    // Predicated region
    $region30: #{tpu_custom_call.1} parent=1 // pred_check
      _
    $region31: #{tpu_custom_call.1} parent=1 // pred_check_branch
      %54 = sbr.rel (0) target = $region33
    $region32: #{tpu_custom_call.1} parent=1 // pred_region
      _
    $region33: #{tpu_custom_call.1} parent=1 // pred_fallthru
      _
    // Predicated region
    $region34: #{tpu_custom_call.1} parent=1 // pred_check
      _
    $region35: #{tpu_custom_call.1} parent=1 // pred_check_branch
      %56 = sbr.rel (0) target = $region37
    $region36: #{tpu_custom_call.1} parent=1 // pred_region
      _
    $region37: #{tpu_custom_call.1} parent=1 // pred_fallthru
      _
    // Predicated region
    $region38: #{tpu_custom_call.1} parent=1 // pred_check
      _
    $region39: #{tpu_custom_call.1} parent=1 // pred_check_branch
      %58 = sbr.rel (0) target = $region41
    $region40: #{tpu_custom_call.1} parent=1 // pred_region
      %59 = dma.done [#allocation4], 16384
    $region41: #{tpu_custom_call.1} parent=1 // pred_fallthru
      _
    // Predicated region
    $region42: #{tpu_custom_call.1} parent=1 // pred_check
      _
    $region43: #{tpu_custom_call.1} parent=1 // pred_check_branch
      %61 = sbr.rel (0) target = $region45
    $region44: #{tpu_custom_call.1} parent=1 // pred_region
      %62 = dma.done [#allocation7], 16384
    $region45: #{tpu_custom_call.1} parent=1 // pred_fallthru
      _
    %v63 = vld [vmem:[%s0] sm:$0xff]
    %v64 = vld [vmem:[%s0 + $0x8] sm:$0xff]
    %v65 = vld [vmem:[%s0 + $0x10] sm:$0xff]
    %v66 = vld [vmem:[%s0 + $0x18] sm:$0xff]
    %v67 = vld [vmem:[%s0 + $0x20] sm:$0xff]
    %v68 = vld [vmem:[%s0 + $0x28] sm:$0xff]
    %v69 = vld [vmem:[%s0 + $0x30] sm:$0xff]
    %v70 = vld [vmem:[%s0 + $0x38] sm:$0xff]
    %v71 = vld [vmem:[%s0 + $0x40] sm:$0xff]
    %v72 = vld [vmem:[%s0 + $0x48] sm:$0xff]
    %v73 = vld [vmem:[%s0 + $0x50] sm:$0xff]
    %v74 = vld [vmem:[%s0 + $0x58] sm:$0xff]
    %v75 = vld [vmem:[%s0 + $0x60] sm:$0xff]
    %v76 = vld [vmem:[%s0 + $0x68] sm:$0xff]
    %v77 = vld [vmem:[%s0 + $0x70] sm:$0xff]
    %v78 = vld [vmem:[%s0 + $0x78] sm:$0xff]
    %v79 = vld [vmem:[%s1] sm:$0xff]
    %v80 = vld [vmem:[%s1 + $0x8] sm:$0xff]
    %v81 = vld [vmem:[%s1 + $0x10] sm:$0x3]
    %v82 = vld [vmem:[%s1 + $0x18] sm:$0x3]
    %v83 = vld [vmem:[%s2] sm:$0x3]
    %v85 = vlaneseq
    %v86 = vshrl.u32 %v85, 7
    %v87 = vsub.s32 0, %v86
    %v88 = vrot.slane %v83, %v87
    %v89 = vlaneseq
    %v90 = vshrl.u32 %v89, 7
    %v91 = vsub.s32 1, %v90
    %v92 = vrot.slane %v83, %v91
    %vm95 = vcmask 80896
    %v97 = vsel %vm95, %v63, 0
    %v100 = vsel %vm95, %v64, 0
    %v103 = vsel %vm95, %v65, 0
    %v106 = vsel %vm95, %v66, 0
    %v109 = vsel %vm95, %v67, 0
    %v112 = vsel %vm95, %v68, 0
    %v115 = vsel %vm95, %v69, 0
    %v118 = vsel %vm95, %v70, 0
    %v121 = vsel %vm95, %v71, 0
    %v124 = vsel %vm95, %v72, 0
    %v127 = vsel %vm95, %v73, 0
    %v130 = vsel %vm95, %v74, 0
    %v133 = vsel %vm95, %v75, 0
    %v136 = vsel %vm95, %v76, 0
    %v139 = vsel %vm95, %v77, 0
    %v142 = vsel %vm95, %v78, 0
    %vm144 = vcmask 1041408
    %v146 = vsel %vm144, %v81, 0
    %v149 = vsel %vm144, %v82, 0
    %151 = vmatprep.subr.mxu0 0.0
    %152 = vmatpush1.msra.mxu0 0.0
    %153 = vmatprep.subr.mxu0 0.0
    %154 = vmatpush1.msra.mxu0 0.0
    %155 = vmatprep.subr.mxu0 0.0
    %156 = vmatpush1.msra.mxu0 0.0
    %157 = vmatprep.subr.mxu0 0.0
    %158 = vmatpush1.msra.mxu0 0.0
    %159 = vmatprep.subr.mxu0 0.0
    %160 = vmatpush1.msra.mxu0 0.0
    %161 = vmatprep.subr.mxu0 0.0
    %162 = vmatpush1.msra.mxu0 0.0
    %163 = vmatprep.subr.mxu0 0.0
    %164 = vmatpush1.msra.mxu0 0.0
    %165 = vmatprep.subr.mxu0 0.0
    %166 = vmatpush1.msra.mxu0 0.0
    %167 = vmatprep.subr.mxu0 0.0
    %168 = vmatpush1.msra.mxu0 0.0
    %169 = vmatprep.subr.mxu0 0.0
    %170 = vmatpush1.msra.mxu0 0.0
    %171 = vmatprep.subr.mxu0 0.0
    %172 = vmatpush1.msra.mxu0 0.0
    %173 = vmatprep.subr.mxu0 0.0
    %174 = vmatpush1.msra.mxu0 0.0
    %175 = vmatprep.subr.mxu0 0.0
    %176 = vmatpush1.msra.mxu0 0.0
    %177 = vmatprep.subr.mxu0 0.0
    %178 = vmatpush1.msra.mxu0 0.0
    %179 = vmatprep.subr.mxu0 %v149
    %180 = vmatpush1.msra.mxu0 %v146
    %181 = vmatprep.subr.mxu0 %v80
    %182 = vmatpush1.msra.mxu0 %v79
    %183 = vmatprep.subr.mxu0 0.0
    %184 = vmatpush2.msra.mxu0 0.0
    %185 = vmatprep.subr.mxu0 0.0
    %186 = vmatpush2.msra.mxu0 0.0
    %187 = vmatprep.subr.mxu0 0.0
    %188 = vmatpush2.msra.mxu0 0.0
    %189 = vmatprep.subr.mxu0 0.0
    %190 = vmatpush2.msra.mxu0 0.0
    %191 = vmatprep.subr.mxu0 0.0
    %192 = vmatpush2.msra.mxu0 0.0
    %193 = vmatprep.subr.mxu0 0.0
    %194 = vmatpush2.msra.mxu0 0.0
    %195 = vmatprep.subr.mxu0 0.0
    %196 = vmatpush2.msra.mxu0 0.0
    %197 = vmatprep.subr.mxu0 0.0
    %198 = vmatpush2.msra.mxu0 0.0
    %199 = vmatprep.subr.mxu0 0.0
    %200 = vmatpush2.msra.mxu0 0.0
    %201 = vmatprep.subr.mxu0 0.0
    %202 = vmatpush2.msra.mxu0 0.0
    %203 = vmatprep.subr.mxu0 0.0
    %204 = vmatpush2.msra.mxu0 0.0
    %205 = vmatprep.subr.mxu0 0.0
    %206 = vmatpush2.msra.mxu0 0.0
    %207 = vmatprep.subr.mxu0 0.0
    %208 = vmatpush2.msra.mxu0 0.0
    %209 = vmatprep.subr.mxu0 0.0
    %210 = vmatpush2.msra.mxu0 0.0
    %211 = vmatprep.subr.mxu0 0.0
    %212 = vmatpush2.msra.mxu0 0.0
    %213 = vmatprep.subr.mxu0 0.0
    %214 = vmatpush2.msra.mxu0 0.0
    %215 = vmatprep.mubr.f32.mxu0 0.0
    %216 = vmatmul.mubr.f32.gmra.mxu0 %v97
    %v217 = vpop.f32.mrf.mxu0
    %v218 = vadd.f32 %v88, %v217
    %v219 = vpop.f32.mrf.mxu0
    %v220 = vadd.f32 %v92, %v219
    %221 = vmatprep.mubr.f32.mxu0 0.0
    %222 = vmatmul.mubr.f32.gmra.mxu0 %v100
    %v223 = vpop.f32.mrf.mxu0
    %v224 = vadd.f32 %v88, %v223
    %v225 = vpop.f32.mrf.mxu0
    %v226 = vadd.f32 %v92, %v225
    %227 = vmatprep.mubr.f32.mxu0 0.0
    %228 = vmatmul.mubr.f32.gmra.mxu0 %v103
    %v229 = vpop.f32.mrf.mxu0
    %v230 = vadd.f32 %v88, %v229
    %v231 = vpop.f32.mrf.mxu0
    %v232 = vadd.f32 %v92, %v231
    %233 = vmatprep.mubr.f32.mxu0 0.0
    %234 = vmatmul.mubr.f32.gmra.mxu0 %v106
    %v235 = vpop.f32.mrf.mxu0
    %v236 = vadd.f32 %v88, %v235
    %v237 = vpop.f32.mrf.mxu0
    %v238 = vadd.f32 %v92, %v237
    %239 = vmatprep.mubr.f32.mxu0 0.0
    %240 = vmatmul.mubr.f32.gmra.mxu0 %v109
    %v241 = vpop.f32.mrf.mxu0
    %v242 = vadd.f32 %v88, %v241
    %v243 = vpop.f32.mrf.mxu0
    %v244 = vadd.f32 %v92, %v243
    %245 = vmatprep.mubr.f32.mxu0 0.0
    %246 = vmatmul.mubr.f32.gmra.mxu0 %v112
    %v247 = vpop.f32.mrf.mxu0
    %v248 = vadd.f32 %v88, %v247
    %v249 = vpop.f32.mrf.mxu0
    %v250 = vadd.f32 %v92, %v249
    %251 = vmatprep.mubr.f32.mxu0 0.0
    %252 = vmatmul.mubr.f32.gmra.mxu0 %v115
    %v253 = vpop.f32.mrf.mxu0
    %v254 = vadd.f32 %v88, %v253
    %v255 = vpop.f32.mrf.mxu0
    %v256 = vadd.f32 %v92, %v255
    %257 = vmatprep.mubr.f32.mxu0 0.0
    %258 = vmatmul.mubr.f32.gmra.mxu0 %v118
    %v259 = vpop.f32.mrf.mxu0
    %v260 = vadd.f32 %v88, %v259
    %v261 = vpop.f32.mrf.mxu0
    %v262 = vadd.f32 %v92, %v261
    %263 = vmatprep.mubr.f32.mxu0 0.0
    %264 = vmatmul.mubr.f32.gmra.mxu0 %v121
    %v265 = vpop.f32.mrf.mxu0
    %v266 = vadd.f32 %v88, %v265
    %v267 = vpop.f32.mrf.mxu0
    %v268 = vadd.f32 %v92, %v267
    %269 = vmatprep.mubr.f32.mxu0 0.0
    %270 = vmatmul.mubr.f32.gmra.mxu0 %v124
    %v271 = vpop.f32.mrf.mxu0
    %v272 = vadd.f32 %v88, %v271
    %v273 = vpop.f32.mrf.mxu0
    %v274 = vadd.f32 %v92, %v273
    %275 = vmatprep.mubr.f32.mxu0 0.0
    %276 = vmatmul.mubr.f32.gmra.mxu0 %v127
    %v277 = vpop.f32.mrf.mxu0
    %v278 = vadd.f32 %v88, %v277
    %v279 = vpop.f32.mrf.mxu0
    %v280 = vadd.f32 %v92, %v279
    %281 = vmatprep.mubr.f32.mxu0 0.0
    %282 = vmatmul.mubr.f32.gmra.mxu0 %v130
    %v283 = vpop.f32.mrf.mxu0
    %v284 = vadd.f32 %v88, %v283
    %v285 = vpop.f32.mrf.mxu0
    %v286 = vadd.f32 %v92, %v285
    %287 = vmatprep.mubr.f32.mxu0 0.0
    %288 = vmatmul.mubr.f32.gmra.mxu0 %v133
    %v289 = vpop.f32.mrf.mxu0
    %v290 = vadd.f32 %v88, %v289
    %v291 = vpop.f32.mrf.mxu0
    %v292 = vadd.f32 %v92, %v291
    %293 = vmatprep.mubr.f32.mxu0 0.0
    %294 = vmatmul.mubr.f32.gmra.mxu0 %v136
    %v295 = vpop.f32.mrf.mxu0
    %v296 = vadd.f32 %v88, %v295
    %v297 = vpop.f32.mrf.mxu0
    %v298 = vadd.f32 %v92, %v297
    %299 = vmatprep.mubr.f32.mxu0 0.0
    %300 = vmatmul.mubr.f32.gmra.mxu0 %v139
    %v301 = vpop.f32.mrf.mxu0
    %v302 = vadd.f32 %v88, %v301
    %v303 = vpop.f32.mrf.mxu0
    %v304 = vadd.f32 %v92, %v303
    %305 = vmatprep.mubr.f32.mxu0 0.0
    %306 = vmatmul.mubr.f32.gmra.mxu0 %v142
    %v307 = vpop.f32.mrf.mxu0
    %v308 = vadd.f32 %v88, %v307
    %v309 = vpop.f32.mrf.mxu0
    %v310 = vadd.f32 %v92, %v309
    %311 = vdwg.mxu0
    %vm312 = vcmp.gt.f32.partialorder %v218, 0.0
    %vm313 = vcmp.gt.f32.partialorder %v220, 0.0
    %vm314 = vcmp.gt.f32.partialorder %v224, 0.0
    %vm315 = vcmp.gt.f32.partialorder %v226, 0.0
    %vm316 = vcmp.gt.f32.partialorder %v230, 0.0
    %vm317 = vcmp.gt.f32.partialorder %v232, 0.0
    %vm318 = vcmp.gt.f32.partialorder %v236, 0.0
    %vm319 = vcmp.gt.f32.partialorder %v238, 0.0
    %vm320 = vcmp.gt.f32.partialorder %v242, 0.0
    %vm321 = vcmp.gt.f32.partialorder %v244, 0.0
    %vm322 = vcmp.gt.f32.partialorder %v248, 0.0
    %vm323 = vcmp.gt.f32.partialorder %v250, 0.0
    %vm324 = vcmp.gt.f32.partialorder %v254, 0.0
    %vm325 = vcmp.gt.f32.partialorder %v256, 0.0
    %vm326 = vcmp.gt.f32.partialorder %v260, 0.0
    %vm327 = vcmp.gt.f32.partialorder %v262, 0.0
    %vm328 = vcmp.gt.f32.partialorder %v266, 0.0
    %vm329 = vcmp.gt.f32.partialorder %v268, 0.0
    %vm330 = vcmp.gt.f32.partialorder %v272, 0.0
    %vm331 = vcmp.gt.f32.partialorder %v274, 0.0
    %vm332 = vcmp.gt.f32.partialorder %v278, 0.0
    %vm333 = vcmp.gt.f32.partialorder %v280, 0.0
    %vm334 = vcmp.gt.f32.partialorder %v284, 0.0
    %vm335 = vcmp.gt.f32.partialorder %v286, 0.0
    %vm336 = vcmp.gt.f32.partialorder %v290, 0.0
    %vm337 = vcmp.gt.f32.partialorder %v292, 0.0
    %vm338 = vcmp.gt.f32.partialorder %v296, 0.0
    %vm339 = vcmp.gt.f32.partialorder %v298, 0.0
    %vm340 = vcmp.gt.f32.partialorder %v302, 0.0
    %vm341 = vcmp.gt.f32.partialorder %v304, 0.0
    %vm342 = vcmp.gt.f32.partialorder %v308, 0.0
    %vm343 = vcmp.gt.f32.partialorder %v310, 0.0
    %v344 = vmul.f32 %v218, 0.2
    %v345 = vmul.f32 %v220, 0.2
    %v346 = vmul.f32 %v224, 0.2
    %v347 = vmul.f32 %v226, 0.2
    %v348 = vmul.f32 %v230, 0.2
    %v349 = vmul.f32 %v232, 0.2
    %v350 = vmul.f32 %v236, 0.2
    %v351 = vmul.f32 %v238, 0.2
    %v352 = vmul.f32 %v242, 0.2
    %v353 = vmul.f32 %v244, 0.2
    %v354 = vmul.f32 %v248, 0.2
    %v355 = vmul.f32 %v250, 0.2
    %v356 = vmul.f32 %v254, 0.2
    %v357 = vmul.f32 %v256, 0.2
    %v358 = vmul.f32 %v260, 0.2
    %v359 = vmul.f32 %v262, 0.2
    %v360 = vmul.f32 %v266, 0.2
    %v361 = vmul.f32 %v268, 0.2
    %v362 = vmul.f32 %v272, 0.2
    %v363 = vmul.f32 %v274, 0.2
    %v364 = vmul.f32 %v278, 0.2
    %v365 = vmul.f32 %v280, 0.2
    %v366 = vmul.f32 %v284, 0.2
    %v367 = vmul.f32 %v286, 0.2
    %v368 = vmul.f32 %v290, 0.2
    %v369 = vmul.f32 %v292, 0.2
    %v370 = vmul.f32 %v296, 0.2
    %v371 = vmul.f32 %v298, 0.2
    %v372 = vmul.f32 %v302, 0.2
    %v373 = vmul.f32 %v304, 0.2
    %v374 = vmul.f32 %v308, 0.2
    %v375 = vmul.f32 %v310, 0.2
    %v376 = vsel %vm312, %v218, %v344
    %v377 = vsel %vm313, %v220, %v345
    %v378 = vsel %vm314, %v224, %v346
    %v379 = vsel %vm315, %v226, %v347
    %v380 = vsel %vm316, %v230, %v348
    %v381 = vsel %vm317, %v232, %v349
    %v382 = vsel %vm318, %v236, %v350
    %v383 = vsel %vm319, %v238, %v351
    %v384 = vsel %vm320, %v242, %v352
    %v385 = vsel %vm321, %v244, %v353
    %v386 = vsel %vm322, %v248, %v354
    %v387 = vsel %vm323, %v250, %v355
    %v388 = vsel %vm324, %v254, %v356
    %v389 = vsel %vm325, %v256, %v357
    %v390 = vsel %vm326, %v260, %v358
    %v391 = vsel %vm327, %v262, %v359
    %v392 = vsel %vm328, %v266, %v360
    %v393 = vsel %vm329, %v268, %v361
    %v394 = vsel %vm330, %v272, %v362
    %v395 = vsel %vm331, %v274, %v363
    %v396 = vsel %vm332, %v278, %v364
    %v397 = vsel %vm333, %v280, %v365
    %v398 = vsel %vm334, %v284, %v366
    %v399 = vsel %vm335, %v286, %v367
    %v400 = vsel %vm336, %v290, %v368
    %v401 = vsel %vm337, %v292, %v369
    %v402 = vsel %vm338, %v296, %v370
    %v403 = vsel %vm339, %v298, %v371
    %v404 = vsel %vm340, %v302, %v372
    %v405 = vsel %vm341, %v304, %v373
    %v406 = vsel %vm342, %v308, %v374
    %v407 = vsel %vm343, %v310, %v375
    %v408 = vld [vmem:[#allocation3] sm:$0xff]
    %v409 = vld [vmem:[#allocation3 + $0x8] sm:$0xff]
    %v410 = vld [vmem:[#allocation3 + $0x10] sm:$0xff]
    %v411 = vld [vmem:[#allocation3 + $0x18] sm:$0xff]
    %v412 = vld [vmem:[#allocation3 + $0x20] sm:$0xff]
    %v413 = vld [vmem:[#allocation3 + $0x28] sm:$0xff]
    %v414 = vld [vmem:[#allocation3 + $0x30] sm:$0xff]
    %v415 = vld [vmem:[#allocation3 + $0x38] sm:$0xff]
    %v416 = vld [vmem:[#allocation3 + $0x40] sm:$0xff]
    %v417 = vld [vmem:[#allocation3 + $0x48] sm:$0xff]
    %v418 = vld [vmem:[#allocation3 + $0x50] sm:$0xff]
    %v419 = vld [vmem:[#allocation3 + $0x58] sm:$0xff]
    %v420 = vld [vmem:[#allocation3 + $0x60] sm:$0xff]
    %v421 = vld [vmem:[#allocation3 + $0x68] sm:$0xff]
    %v422 = vld [vmem:[#allocation3 + $0x70] sm:$0xff]
    %v423 = vld [vmem:[#allocation3 + $0x78] sm:$0xff]
    %v424 = vld [vmem:[#allocation3 + $0x80] sm:$0xff]
    %v425 = vld [vmem:[#allocation3 + $0x88] sm:$0xff]
    %v426 = vld [vmem:[#allocation3 + $0x90] sm:$0xff]
    %v427 = vld [vmem:[#allocation3 + $0x98] sm:$0xff]
    %v428 = vld [vmem:[#allocation3 + $0xa0] sm:$0xff]
    %v429 = vld [vmem:[#allocation3 + $0xa8] sm:$0xff]
    %v430 = vld [vmem:[#allocation3 + $0xb0] sm:$0xff]
    %v431 = vld [vmem:[#allocation3 + $0xb8] sm:$0xff]
    %v432 = vld [vmem:[#allocation3 + $0xc0] sm:$0xff]
    %v433 = vld [vmem:[#allocation3 + $0xc8] sm:$0xff]
    %v434 = vld [vmem:[#allocation3 + $0xd0] sm:$0xff]
    %v435 = vld [vmem:[#allocation3 + $0xd8] sm:$0xff]
    %v436 = vld [vmem:[#allocation3 + $0xe0] sm:$0xff]
    %v437 = vld [vmem:[#allocation3 + $0xe8] sm:$0xff]
    %v438 = vld [vmem:[#allocation3 + $0xf0] sm:$0xff]
    %v439 = vld [vmem:[#allocation3 + $0xf8] sm:$0xff]
    %v440 = vld [vmem:[#allocation3 + $0x100] sm:$0xff]
    %v441 = vld [vmem:[#allocation3 + $0x108] sm:$0xff]
    %v442 = vld [vmem:[#allocation3 + $0x110] sm:$0xff]
    %v443 = vld [vmem:[#allocation3 + $0x118] sm:$0xff]
    %v444 = vld [vmem:[#allocation3 + $0x120] sm:$0xff]
    %v445 = vld [vmem:[#allocation3 + $0x128] sm:$0xff]
    %v446 = vld [vmem:[#allocation3 + $0x130] sm:$0xff]
    %v447 = vld [vmem:[#allocation3 + $0x138] sm:$0xff]
    %v448 = vld [vmem:[#allocation3 + $0x140] sm:$0xff]
    %v449 = vld [vmem:[#allocation3 + $0x148] sm:$0xff]
    %v450 = vld [vmem:[#allocation3 + $0x150] sm:$0xff]
    %v451 = vld [vmem:[#allocation3 + $0x158] sm:$0xff]
    %v452 = vld [vmem:[#allocation3 + $0x160] sm:$0xff]
    %v453 = vld [vmem:[#allocation3 + $0x168] sm:$0xff]
    %v454 = vld [vmem:[#allocation3 + $0x170] sm:$0xff]
    %v455 = vld [vmem:[#allocation3 + $0x178] sm:$0xff]
    %v456 = vld [vmem:[#allocation3 + $0x180] sm:$0xff]
    %v457 = vld [vmem:[#allocation3 + $0x188] sm:$0xff]
    %v458 = vld [vmem:[#allocation3 + $0x190] sm:$0xff]
    %v459 = vld [vmem:[#allocation3 + $0x198] sm:$0xff]
    %v460 = vld [vmem:[#allocation3 + $0x1a0] sm:$0xff]
    %v461 = vld [vmem:[#allocation3 + $0x1a8] sm:$0xff]
    %v462 = vld [vmem:[#allocation3 + $0x1b0] sm:$0xff]
    %v463 = vld [vmem:[#allocation3 + $0x1b8] sm:$0xff]
    %v464 = vld [vmem:[#allocation3 + $0x1c0] sm:$0xff]
    %v465 = vld [vmem:[#allocation3 + $0x1c8] sm:$0xff]
    %v466 = vld [vmem:[#allocation3 + $0x1d0] sm:$0xff]
    %v467 = vld [vmem:[#allocation3 + $0x1d8] sm:$0xff]
    %v468 = vld [vmem:[#allocation3 + $0x1e0] sm:$0xff]
    %v469 = vld [vmem:[#allocation3 + $0x1e8] sm:$0xff]
    %v470 = vld [vmem:[#allocation3 + $0x1f0] sm:$0xff]
    %v471 = vld [vmem:[#allocation3 + $0x1f8] sm:$0xff]
    %v472 = vld [vmem:[#allocation3 + $0x200] sm:$0xff]
    %v473 = vld [vmem:[#allocation3 + $0x208] sm:$0xff]
    %v474 = vld [vmem:[#allocation3 + $0x210] sm:$0xff]
    %v475 = vld [vmem:[#allocation3 + $0x218] sm:$0xff]
    %v476 = vld [vmem:[#allocation3 + $0x220] sm:$0xff]
    %v477 = vld [vmem:[#allocation3 + $0x228] sm:$0xff]
    %v478 = vld [vmem:[#allocation3 + $0x230] sm:$0xff]
    %v479 = vld [vmem:[#allocation3 + $0x238] sm:$0xff]
    %v480 = vld [vmem:[#allocation3 + $0x240] sm:$0xff]
    %v481 = vld [vmem:[#allocation3 + $0x248] sm:$0xff]
    %v482 = vld [vmem:[#allocation3 + $0x250] sm:$0xff]
    %v483 = vld [vmem:[#allocation3 + $0x258] sm:$0xff]
    %v484 = vld [vmem:[#allocation3 + $0x260] sm:$0xff]
    %v485 = vld [vmem:[#allocation3 + $0x268] sm:$0xff]
    %v486 = vld [vmem:[#allocation3 + $0x270] sm:$0xff]
    %v487 = vld [vmem:[#allocation3 + $0x278] sm:$0xff]
    %v488 = vld [vmem:[#allocation3 + $0x280] sm:$0xff]
    %v489 = vld [vmem:[#allocation3 + $0x288] sm:$0xff]
    %v490 = vld [vmem:[#allocation3 + $0x290] sm:$0xff]
    %v491 = vld [vmem:[#allocation3 + $0x298] sm:$0xff]
    %v492 = vld [vmem:[#allocation3 + $0x2a0] sm:$0xff]
    %v493 = vld [vmem:[#allocation3 + $0x2a8] sm:$0xff]
    %v494 = vld [vmem:[#allocation3 + $0x2b0] sm:$0xff]
    %v495 = vld [vmem:[#allocation3 + $0x2b8] sm:$0xff]
    %v496 = vld [vmem:[#allocation3 + $0x2c0] sm:$0xff]
    %v497 = vld [vmem:[#allocation3 + $0x2c8] sm:$0xff]
    %v498 = vld [vmem:[#allocation3 + $0x2d0] sm:$0xff]
    %v499 = vld [vmem:[#allocation3 + $0x2d8] sm:$0xff]
    %v500 = vld [vmem:[#allocation3 + $0x2e0] sm:$0xff]
    %v501 = vld [vmem:[#allocation3 + $0x2e8] sm:$0xff]
    %v502 = vld [vmem:[#allocation3 + $0x2f0] sm:$0xff]
    %v503 = vld [vmem:[#allocation3 + $0x2f8] sm:$0xff]
    %v504 = vld [vmem:[#allocation3 + $0x300] sm:$0xff]
    %v505 = vld [vmem:[#allocation3 + $0x308] sm:$0xff]
    %v506 = vld [vmem:[#allocation3 + $0x310] sm:$0xff]
    %v507 = vld [vmem:[#allocation3 + $0x318] sm:$0xff]
    %v508 = vld [vmem:[#allocation3 + $0x320] sm:$0xff]
    %v509 = vld [vmem:[#allocation3 + $0x328] sm:$0xff]
    %v510 = vld [vmem:[#allocation3 + $0x330] sm:$0xff]
    %v511 = vld [vmem:[#allocation3 + $0x338] sm:$0xff]
    %v512 = vld [vmem:[#allocation3 + $0x340] sm:$0xff]
    %v513 = vld [vmem:[#allocation3 + $0x348] sm:$0xff]
    %v514 = vld [vmem:[#allocation3 + $0x350] sm:$0xff]
    %v515 = vld [vmem:[#allocation3 + $0x358] sm:$0xff]
    %v516 = vld [vmem:[#allocation3 + $0x360] sm:$0xff]
    %v517 = vld [vmem:[#allocation3 + $0x368] sm:$0xff]
    %v518 = vld [vmem:[#allocation3 + $0x370] sm:$0xff]
    %v519 = vld [vmem:[#allocation3 + $0x378] sm:$0xff]
    %v520 = vld [vmem:[#allocation3 + $0x380] sm:$0xff]
    %v521 = vld [vmem:[#allocation3 + $0x388] sm:$0xff]
    %v522 = vld [vmem:[#allocation3 + $0x390] sm:$0xff]
    %v523 = vld [vmem:[#allocation3 + $0x398] sm:$0xff]
    %v524 = vld [vmem:[#allocation3 + $0x3a0] sm:$0xff]
    %v525 = vld [vmem:[#allocation3 + $0x3a8] sm:$0xff]
    %v526 = vld [vmem:[#allocation3 + $0x3b0] sm:$0xff]
    %v527 = vld [vmem:[#allocation3 + $0x3b8] sm:$0xff]
    %v528 = vld [vmem:[#allocation3 + $0x3c0] sm:$0xff]
    %v529 = vld [vmem:[#allocation3 + $0x3c8] sm:$0xff]
    %v530 = vld [vmem:[#allocation3 + $0x3d0] sm:$0xff]
    %v531 = vld [vmem:[#allocation3 + $0x3d8] sm:$0xff]
    %v532 = vld [vmem:[#allocation3 + $0x3e0] sm:$0xff]
    %v533 = vld [vmem:[#allocation3 + $0x3e8] sm:$0xff]
    %v534 = vld [vmem:[#allocation3 + $0x3f0] sm:$0xff]
    %v535 = vld [vmem:[#allocation3 + $0x3f8] sm:$0xff]
    %v536 = vld [vmem:[%s4] sm:$0xf]
    %v538 = vlaneseq
    %v539 = vshrl.u32 %v538, 7
    %v540 = vsub.s32 0, %v539
    %v541 = vrot.slane %v536, %v540
    %v542 = vlaneseq
    %v543 = vshrl.u32 %v542, 7
    %v544 = vsub.s32 1, %v543
    %v545 = vrot.slane %v536, %v544
    %v546 = vlaneseq
    %v547 = vshrl.u32 %v546, 7
    %v548 = vsub.s32 2, %v547
    %v549 = vrot.slane %v536, %v548
    %v550 = vlaneseq
    %v551 = vshrl.u32 %v550, 7
    %v552 = vsub.s32 3, %v551
    %v553 = vrot.slane %v536, %v552
    %558 = vmatprep.subr.mxu0 %v469
    %559 = vmatpush1.msra.mxu0 %v468
    %560 = vmatprep.subr.mxu0 %v465
    %561 = vmatpush1.msra.mxu0 %v464
    %562 = vmatprep.subr.mxu0 %v461
    %563 = vmatpush1.msra.mxu0 %v460
    %564 = vmatprep.subr.mxu0 %v457
    %565 = vmatpush1.msra.mxu0 %v456
    %566 = vmatprep.subr.mxu0 %v453
    %567 = vmatpush1.msra.mxu0 %v452
    %568 = vmatprep.subr.mxu0 %v449
    %569 = vmatpush1.msra.mxu0 %v448
    %570 = vmatprep.subr.mxu0 %v445
    %571 = vmatpush1.msra.mxu0 %v444
    %572 = vmatprep.subr.mxu0 %v441
    %573 = vmatpush1.msra.mxu0 %v440
    %574 = vmatprep.subr.mxu0 %v437
    %575 = vmatpush1.msra.mxu0 %v436
    %576 = vmatprep.subr.mxu0 %v433
    %577 = vmatpush1.msra.mxu0 %v432
    %578 = vmatprep.subr.mxu0 %v429
    %579 = vmatpush1.msra.mxu0 %v428
    %580 = vmatprep.subr.mxu0 %v425
    %581 = vmatpush1.msra.mxu0 %v424
    %582 = vmatprep.subr.mxu0 %v421
    %583 = vmatpush1.msra.mxu0 %v420
    %584 = vmatprep.subr.mxu0 %v417
    %585 = vmatpush1.msra.mxu0 %v416
    %586 = vmatprep.subr.mxu0 %v413
    %587 = vmatpush1.msra.mxu0 %v412
    %588 = vmatprep.subr.mxu0 %v409
    %589 = vmatpush1.msra.mxu0 %v408
    %590 = vmatprep.subr.mxu0 %v533
    %591 = vmatpush2.msra.mxu0 %v532
    %592 = vmatprep.subr.mxu0 %v529
    %593 = vmatpush2.msra.mxu0 %v528
    %594 = vmatprep.subr.mxu0 %v525
    %595 = vmatpush2.msra.mxu0 %v524
    %596 = vmatprep.subr.mxu0 %v521
    %597 = vmatpush2.msra.mxu0 %v520
    %598 = vmatprep.subr.mxu0 %v517
    %599 = vmatpush2.msra.mxu0 %v516
    %600 = vmatprep.subr.mxu0 %v513
    %601 = vmatpush2.msra.mxu0 %v512
    %602 = vmatprep.subr.mxu0 %v509
    %603 = vmatpush2.msra.mxu0 %v508
    %604 = vmatprep.subr.mxu0 %v505
    %605 = vmatpush2.msra.mxu0 %v504
    %606 = vmatprep.subr.mxu0 %v501
    %607 = vmatpush2.msra.mxu0 %v500
    %608 = vmatprep.subr.mxu0 %v497
    %609 = vmatpush2.msra.mxu0 %v496
    %610 = vmatprep.subr.mxu0 %v493
    %611 = vmatpush2.msra.mxu0 %v492
    %612 = vmatprep.subr.mxu0 %v489
    %613 = vmatpush2.msra.mxu0 %v488
    %614 = vmatprep.subr.mxu0 %v485
    %615 = vmatpush2.msra.mxu0 %v484
    %616 = vmatprep.subr.mxu0 %v481
    %617 = vmatpush2.msra.mxu0 %v480
    %618 = vmatprep.subr.mxu0 %v477
    %619 = vmatpush2.msra.mxu0 %v476
    %620 = vmatprep.subr.mxu0 %v473
    %621 = vmatpush2.msra.mxu0 %v472
    %622 = vmatprep.mubr.f32.mxu0 %v377
    %623 = vmatmul.mubr.f32.gmra.mxu0 %v376
    %v624 = vpop.f32.mrf.mxu0
    %v625 = vadd.f32 %v541, %v624
    %v626 = vpop.f32.mrf.mxu0
    %v627 = vadd.f32 %v545, %v626
    %628 = vmatprep.mubr.f32.mxu0 %v379
    %629 = vmatmul.mubr.f32.gmra.mxu0 %v378
    %v630 = vpop.f32.mrf.mxu0
    %v631 = vadd.f32 %v541, %v630
    %v632 = vpop.f32.mrf.mxu0
    %v633 = vadd.f32 %v545, %v632
    %634 = vmatprep.mubr.f32.mxu0 %v381
    %635 = vmatmul.mubr.f32.gmra.mxu0 %v380
    %v636 = vpop.f32.mrf.mxu0
    %v637 = vadd.f32 %v541, %v636
    %v638 = vpop.f32.mrf.mxu0
    %v639 = vadd.f32 %v545, %v638
    %640 = vmatprep.mubr.f32.mxu0 %v383
    %641 = vmatmul.mubr.f32.gmra.mxu0 %v382
    %v642 = vpop.f32.mrf.mxu0
    %v643 = vadd.f32 %v541, %v642
    %v644 = vpop.f32.mrf.mxu0
    %v645 = vadd.f32 %v545, %v644
    %646 = vmatprep.mubr.f32.mxu0 %v385
    %647 = vmatmul.mubr.f32.gmra.mxu0 %v384
    %v648 = vpop.f32.mrf.mxu0
    %v649 = vadd.f32 %v541, %v648
    %v650 = vpop.f32.mrf.mxu0
    %v651 = vadd.f32 %v545, %v650
    %652 = vmatprep.mubr.f32.mxu0 %v387
    %653 = vmatmul.mubr.f32.gmra.mxu0 %v386
    %v654 = vpop.f32.mrf.mxu0
    %v655 = vadd.f32 %v541, %v654
    %v656 = vpop.f32.mrf.mxu0
    %v657 = vadd.f32 %v545, %v656
    %658 = vmatprep.mubr.f32.mxu0 %v389
    %659 = vmatmul.mubr.f32.gmra.mxu0 %v388
    %v660 = vpop.f32.mrf.mxu0
    %v661 = vadd.f32 %v541, %v660
    %v662 = vpop.f32.mrf.mxu0
    %v663 = vadd.f32 %v545, %v662
    %664 = vmatprep.mubr.f32.mxu0 %v391
    %665 = vmatmul.mubr.f32.gmra.mxu0 %v390
    %v666 = vpop.f32.mrf.mxu0
    %v667 = vadd.f32 %v541, %v666
    %v668 = vpop.f32.mrf.mxu0
    %v669 = vadd.f32 %v545, %v668
    %670 = vmatprep.mubr.f32.mxu0 %v393
    %671 = vmatmul.mubr.f32.gmra.mxu0 %v392
    %v672 = vpop.f32.mrf.mxu0
    %v673 = vadd.f32 %v541, %v672
    %v674 = vpop.f32.mrf.mxu0
    %v675 = vadd.f32 %v545, %v674
    %676 = vmatprep.mubr.f32.mxu0 %v395
    %677 = vmatmul.mubr.f32.gmra.mxu0 %v394
    %v678 = vpop.f32.mrf.mxu0
    %v679 = vadd.f32 %v541, %v678
    %v680 = vpop.f32.mrf.mxu0
    %v681 = vadd.f32 %v545, %v680
    %682 = vmatprep.mubr.f32.mxu0 %v397
    %683 = vmatmul.mubr.f32.gmra.mxu0 %v396
    %v684 = vpop.f32.mrf.mxu0
    %v685 = vadd.f32 %v541, %v684
    %v686 = vpop.f32.mrf.mxu0
    %v687 = vadd.f32 %v545, %v686
    %688 = vmatprep.mubr.f32.mxu0 %v399
    %689 = vmatmul.mubr.f32.gmra.mxu0 %v398
    %v690 = vpop.f32.mrf.mxu0
    %v691 = vadd.f32 %v541, %v690
    %v692 = vpop.f32.mrf.mxu0
    %v693 = vadd.f32 %v545, %v692
    %694 = vmatprep.mubr.f32.mxu0 %v401
    %695 = vmatmul.mubr.f32.gmra.mxu0 %v400
    %v696 = vpop.f32.mrf.mxu0
    %v697 = vadd.f32 %v541, %v696
    %v698 = vpop.f32.mrf.mxu0
    %v699 = vadd.f32 %v545, %v698
    %700 = vmatprep.mubr.f32.mxu0 %v403
    %701 = vmatmul.mubr.f32.gmra.mxu0 %v402
    %v702 = vpop.f32.mrf.mxu0
    %v703 = vadd.f32 %v541, %v702
    %v704 = vpop.f32.mrf.mxu0
    %v705 = vadd.f32 %v545, %v704
    %706 = vmatprep.mubr.f32.mxu0 %v405
    %707 = vmatmul.mubr.f32.gmra.mxu0 %v404
    %v708 = vpop.f32.mrf.mxu0
    %v709 = vadd.f32 %v541, %v708
    %v710 = vpop.f32.mrf.mxu0
    %v711 = vadd.f32 %v545, %v710
    %712 = vmatprep.mubr.f32.mxu0 %v407
    %713 = vmatmul.mubr.f32.gmra.mxu0 %v406
    %v714 = vpop.f32.mrf.mxu0
    %v715 = vadd.f32 %v541, %v714
    %v716 = vpop.f32.mrf.mxu0
    %v717 = vadd.f32 %v545, %v716
    %718 = vdwg.mxu0
    %719 = vmatprep.subr.mxu0 %v471
    %720 = vmatpush1.msra.mxu0 %v470
    %721 = vmatprep.subr.mxu0 %v467
    %722 = vmatpush1.msra.mxu0 %v466
    %723 = vmatprep.subr.mxu0 %v463
    %724 = vmatpush1.msra.mxu0 %v462
    %725 = vmatprep.subr.mxu0 %v459
    %726 = vmatpush1.msra.mxu0 %v458
    %727 = vmatprep.subr.mxu0 %v455
    %728 = vmatpush1.msra.mxu0 %v454
    %729 = vmatprep.subr.mxu0 %v451
    %730 = vmatpush1.msra.mxu0 %v450
    %731 = vmatprep.subr.mxu0 %v447
    %732 = vmatpush1.msra.mxu0 %v446
    %733 = vmatprep.subr.mxu0 %v443
    %734 = vmatpush1.msra.mxu0 %v442
    %735 = vmatprep.subr.mxu0 %v439
    %736 = vmatpush1.msra.mxu0 %v438
    %737 = vmatprep.subr.mxu0 %v435
    %738 = vmatpush1.msra.mxu0 %v434
    %739 = vmatprep.subr.mxu0 %v431
    %740 = vmatpush1.msra.mxu0 %v430
    %741 = vmatprep.subr.mxu0 %v427
    %742 = vmatpush1.msra.mxu0 %v426
    %743 = vmatprep.subr.mxu0 %v423
    %744 = vmatpush1.msra.mxu0 %v422
    %745 = vmatprep.subr.mxu0 %v419
    %746 = vmatpush1.msra.mxu0 %v418
    %747 = vmatprep.subr.mxu0 %v415
    %748 = vmatpush1.msra.mxu0 %v414
    %749 = vmatprep.subr.mxu0 %v411
    %750 = vmatpush1.msra.mxu0 %v410
    %751 = vmatprep.subr.mxu0 %v535
    %752 = vmatpush2.msra.mxu0 %v534
    %753 = vmatprep.subr.mxu0 %v531
    %754 = vmatpush2.msra.mxu0 %v530
    %755 = vmatprep.subr.mxu0 %v527
    %756 = vmatpush2.msra.mxu0 %v526
    %757 = vmatprep.subr.mxu0 %v523
    %758 = vmatpush2.msra.mxu0 %v522
    %759 = vmatprep.subr.mxu0 %v519
    %760 = vmatpush2.msra.mxu0 %v518
    %761 = vmatprep.subr.mxu0 %v515
    %762 = vmatpush2.msra.mxu0 %v514
    %763 = vmatprep.subr.mxu0 %v511
    %764 = vmatpush2.msra.mxu0 %v510
    %765 = vmatprep.subr.mxu0 %v507
    %766 = vmatpush2.msra.mxu0 %v506
    %767 = vmatprep.subr.mxu0 %v503
    %768 = vmatpush2.msra.mxu0 %v502
    %769 = vmatprep.subr.mxu0 %v499
    %770 = vmatpush2.msra.mxu0 %v498
    %771 = vmatprep.subr.mxu0 %v495
    %772 = vmatpush2.msra.mxu0 %v494
    %773 = vmatprep.subr.mxu0 %v491
    %774 = vmatpush2.msra.mxu0 %v490
    %775 = vmatprep.subr.mxu0 %v487
    %776 = vmatpush2.msra.mxu0 %v486
    %777 = vmatprep.subr.mxu0 %v483
    %778 = vmatpush2.msra.mxu0 %v482
    %779 = vmatprep.subr.mxu0 %v479
    %780 = vmatpush2.msra.mxu0 %v478
    %781 = vmatprep.subr.mxu0 %v475
    %782 = vmatpush2.msra.mxu0 %v474
    %783 = vmatprep.mubr.f32.mxu0 %v377
    %784 = vmatmul.mubr.f32.gmra.mxu0 %v376
    %v785 = vpop.f32.mrf.mxu0
    %v786 = vadd.f32 %v549, %v785
    %v787 = vpop.f32.mrf.mxu0
    %v788 = vadd.f32 %v553, %v787
    %789 = vmatprep.mubr.f32.mxu0 %v379
    %790 = vmatmul.mubr.f32.gmra.mxu0 %v378
    %v791 = vpop.f32.mrf.mxu0
    %v792 = vadd.f32 %v549, %v791
    %v793 = vpop.f32.mrf.mxu0
    %v794 = vadd.f32 %v553, %v793
    %795 = vmatprep.mubr.f32.mxu0 %v381
    %796 = vmatmul.mubr.f32.gmra.mxu0 %v380
    %v797 = vpop.f32.mrf.mxu0
    %v798 = vadd.f32 %v549, %v797
    %v799 = vpop.f32.mrf.mxu0
    %v800 = vadd.f32 %v553, %v799
    %801 = vmatprep.mubr.f32.mxu0 %v383
    %802 = vmatmul.mubr.f32.gmra.mxu0 %v382
    %v803 = vpop.f32.mrf.mxu0
    %v804 = vadd.f32 %v549, %v803
    %v805 = vpop.f32.mrf.mxu0
    %v806 = vadd.f32 %v553, %v805
    %807 = vmatprep.mubr.f32.mxu0 %v385
    %808 = vmatmul.mubr.f32.gmra.mxu0 %v384
    %v809 = vpop.f32.mrf.mxu0
    %v810 = vadd.f32 %v549, %v809
    %v811 = vpop.f32.mrf.mxu0
    %v812 = vadd.f32 %v553, %v811
    %813 = vmatprep.mubr.f32.mxu0 %v387
    %814 = vmatmul.mubr.f32.gmra.mxu0 %v386
    %v815 = vpop.f32.mrf.mxu0
    %v816 = vadd.f32 %v549, %v815
    %v817 = vpop.f32.mrf.mxu0
    %v818 = vadd.f32 %v553, %v817
    %819 = vmatprep.mubr.f32.mxu0 %v389
    %820 = vmatmul.mubr.f32.gmra.mxu0 %v388
    %v821 = vpop.f32.mrf.mxu0
    %v822 = vadd.f32 %v549, %v821
    %v823 = vpop.f32.mrf.mxu0
    %v824 = vadd.f32 %v553, %v823
    %825 = vmatprep.mubr.f32.mxu0 %v391
    %826 = vmatmul.mubr.f32.gmra.mxu0 %v390
    %v827 = vpop.f32.mrf.mxu0
    %v828 = vadd.f32 %v549, %v827
    %v829 = vpop.f32.mrf.mxu0
    %v830 = vadd.f32 %v553, %v829
    %831 = vmatprep.mubr.f32.mxu0 %v393
    %832 = vmatmul.mubr.f32.gmra.mxu0 %v392
    %v833 = vpop.f32.mrf.mxu0
    %v834 = vadd.f32 %v549, %v833
    %v835 = vpop.f32.mrf.mxu0
    %v836 = vadd.f32 %v553, %v835
    %837 = vmatprep.mubr.f32.mxu0 %v395
    %838 = vmatmul.mubr.f32.gmra.mxu0 %v394
    %v839 = vpop.f32.mrf.mxu0
    %v840 = vadd.f32 %v549, %v839
    %v841 = vpop.f32.mrf.mxu0
    %v842 = vadd.f32 %v553, %v841
    %843 = vmatprep.mubr.f32.mxu0 %v397
    %844 = vmatmul.mubr.f32.gmra.mxu0 %v396
    %v845 = vpop.f32.mrf.mxu0
    %v846 = vadd.f32 %v549, %v845
    %v847 = vpop.f32.mrf.mxu0
    %v848 = vadd.f32 %v553, %v847
    %849 = vmatprep.mubr.f32.mxu0 %v399
    %850 = vmatmul.mubr.f32.gmra.mxu0 %v398
    %v851 = vpop.f32.mrf.mxu0
    %v852 = vadd.f32 %v549, %v851
    %v853 = vpop.f32.mrf.mxu0
    %v854 = vadd.f32 %v553, %v853
    %855 = vmatprep.mubr.f32.mxu0 %v401
    %856 = vmatmul.mubr.f32.gmra.mxu0 %v400
    %v857 = vpop.f32.mrf.mxu0
    %v858 = vadd.f32 %v549, %v857
    %v859 = vpop.f32.mrf.mxu0
    %v860 = vadd.f32 %v553, %v859
    %861 = vmatprep.mubr.f32.mxu0 %v403
    %862 = vmatmul.mubr.f32.gmra.mxu0 %v402
    %v863 = vpop.f32.mrf.mxu0
    %v864 = vadd.f32 %v549, %v863
    %v865 = vpop.f32.mrf.mxu0
    %v866 = vadd.f32 %v553, %v865
    %867 = vmatprep.mubr.f32.mxu0 %v405
    %868 = vmatmul.mubr.f32.gmra.mxu0 %v404
    %v869 = vpop.f32.mrf.mxu0
    %v870 = vadd.f32 %v549, %v869
    %v871 = vpop.f32.mrf.mxu0
    %v872 = vadd.f32 %v553, %v871
    %873 = vmatprep.mubr.f32.mxu0 %v407
    %874 = vmatmul.mubr.f32.gmra.mxu0 %v406
    %v875 = vpop.f32.mrf.mxu0
    %v876 = vadd.f32 %v549, %v875
    %v877 = vpop.f32.mrf.mxu0
    %v878 = vadd.f32 %v553, %v877
    %879 = vdwg.mxu0
    %vm880 = vcmp.gt.f32.partialorder %v625, 0.0
    %vm881 = vcmp.gt.f32.partialorder %v627, 0.0
    %vm882 = vcmp.gt.f32.partialorder %v786, 0.0
    %vm883 = vcmp.gt.f32.partialorder %v788, 0.0
    %vm884 = vcmp.gt.f32.partialorder %v631, 0.0
    %vm885 = vcmp.gt.f32.partialorder %v633, 0.0
    %vm886 = vcmp.gt.f32.partialorder %v792, 0.0
    %vm887 = vcmp.gt.f32.partialorder %v794, 0.0
    %vm888 = vcmp.gt.f32.partialorder %v637, 0.0
    %vm889 = vcmp.gt.f32.partialorder %v639, 0.0
    %vm890 = vcmp.gt.f32.partialorder %v798, 0.0
    %vm891 = vcmp.gt.f32.partialorder %v800, 0.0
    %vm892 = vcmp.gt.f32.partialorder %v643, 0.0
    %vm893 = vcmp.gt.f32.partialorder %v645, 0.0
    %vm894 = vcmp.gt.f32.partialorder %v804, 0.0
    %vm895 = vcmp.gt.f32.partialorder %v806, 0.0
    %vm896 = vcmp.gt.f32.partialorder %v649, 0.0
    %vm897 = vcmp.gt.f32.partialorder %v651, 0.0
    %vm898 = vcmp.gt.f32.partialorder %v810, 0.0
    %vm899 = vcmp.gt.f32.partialorder %v812, 0.0
    %vm900 = vcmp.gt.f32.partialorder %v655, 0.0
    %vm901 = vcmp.gt.f32.partialorder %v657, 0.0
    %vm902 = vcmp.gt.f32.partialorder %v816, 0.0
    %vm903 = vcmp.gt.f32.partialorder %v818, 0.0
    %vm904 = vcmp.gt.f32.partialorder %v661, 0.0
    %vm905 = vcmp.gt.f32.partialorder %v663, 0.0
    %vm906 = vcmp.gt.f32.partialorder %v822, 0.0
    %vm907 = vcmp.gt.f32.partialorder %v824, 0.0
    %vm908 = vcmp.gt.f32.partialorder %v667, 0.0
    %vm909 = vcmp.gt.f32.partialorder %v669, 0.0
    %vm910 = vcmp.gt.f32.partialorder %v828, 0.0
    %vm911 = vcmp.gt.f32.partialorder %v830, 0.0
    %vm912 = vcmp.gt.f32.partialorder %v673, 0.0
    %vm913 = vcmp.gt.f32.partialorder %v675, 0.0
    %vm914 = vcmp.gt.f32.partialorder %v834, 0.0
    %vm915 = vcmp.gt.f32.partialorder %v836, 0.0
    %vm916 = vcmp.gt.f32.partialorder %v679, 0.0
    %vm917 = vcmp.gt.f32.partialorder %v681, 0.0
    %vm918 = vcmp.gt.f32.partialorder %v840, 0.0
    %vm919 = vcmp.gt.f32.partialorder %v842, 0.0
    %vm920 = vcmp.gt.f32.partialorder %v685, 0.0
    %vm921 = vcmp.gt.f32.partialorder %v687, 0.0
    %vm922 = vcmp.gt.f32.partialorder %v846, 0.0
    %vm923 = vcmp.gt.f32.partialorder %v848, 0.0
    %vm924 = vcmp.gt.f32.partialorder %v691, 0.0
    %vm925 = vcmp.gt.f32.partialorder %v693, 0.0
    %vm926 = vcmp.gt.f32.partialorder %v852, 0.0
    %vm927 = vcmp.gt.f32.partialorder %v854, 0.0
    %vm928 = vcmp.gt.f32.partialorder %v697, 0.0
    %vm929 = vcmp.gt.f32.partialorder %v699, 0.0
    %vm930 = vcmp.gt.f32.partialorder %v858, 0.0
    %vm931 = vcmp.gt.f32.partialorder %v860, 0.0
    %vm932 = vcmp.gt.f32.partialorder %v703, 0.0
    %vm933 = vcmp.gt.f32.partialorder %v705, 0.0
    %vm934 = vcmp.gt.f32.partialorder %v864, 0.0
    %vm935 = vcmp.gt.f32.partialorder %v866, 0.0
    %vm936 = vcmp.gt.f32.partialorder %v709, 0.0
    %vm937 = vcmp.gt.f32.partialorder %v711, 0.0
    %vm938 = vcmp.gt.f32.partialorder %v870, 0.0
    %vm939 = vcmp.gt.f32.partialorder %v872, 0.0
    %vm940 = vcmp.gt.f32.partialorder %v715, 0.0
    %vm941 = vcmp.gt.f32.partialorder %v717, 0.0
    %vm942 = vcmp.gt.f32.partialorder %v876, 0.0
    %vm943 = vcmp.gt.f32.partialorder %v878, 0.0
    %v944 = vmul.f32 %v625, 0.2
    %v945 = vmul.f32 %v627, 0.2
    %v946 = vmul.f32 %v786, 0.2
    %v947 = vmul.f32 %v788, 0.2
    %v948 = vmul.f32 %v631, 0.2
    %v949 = vmul.f32 %v633, 0.2
    %v950 = vmul.f32 %v792, 0.2
    %v951 = vmul.f32 %v794, 0.2
    %v952 = vmul.f32 %v637, 0.2
    %v953 = vmul.f32 %v639, 0.2
    %v954 = vmul.f32 %v798, 0.2
    %v955 = vmul.f32 %v800, 0.2
    %v956 = vmul.f32 %v643, 0.2
    %v957 = vmul.f32 %v645, 0.2
    %v958 = vmul.f32 %v804, 0.2
    %v959 = vmul.f32 %v806, 0.2
    %v960 = vmul.f32 %v649, 0.2
    %v961 = vmul.f32 %v651, 0.2
    %v962 = vmul.f32 %v810, 0.2
    %v963 = vmul.f32 %v812, 0.2
    %v964 = vmul.f32 %v655, 0.2
    %v965 = vmul.f32 %v657, 0.2
    %v966 = vmul.f32 %v816, 0.2
    %v967 = vmul.f32 %v818, 0.2
    %v968 = vmul.f32 %v661, 0.2
    %v969 = vmul.f32 %v663, 0.2
    %v970 = vmul.f32 %v822, 0.2
    %v971 = vmul.f32 %v824, 0.2
    %v972 = vmul.f32 %v667, 0.2
    %v973 = vmul.f32 %v669, 0.2
    %v974 = vmul.f32 %v828, 0.2
    %v975 = vmul.f32 %v830, 0.2
    %v976 = vmul.f32 %v673, 0.2
    %v977 = vmul.f32 %v675, 0.2
    %v978 = vmul.f32 %v834, 0.2
    %v979 = vmul.f32 %v836, 0.2
    %v980 = vmul.f32 %v679, 0.2
    %v981 = vmul.f32 %v681, 0.2
    %v982 = vmul.f32 %v840, 0.2
    %v983 = vmul.f32 %v842, 0.2
    %v984 = vmul.f32 %v685, 0.2
    %v985 = vmul.f32 %v687, 0.2
    %v986 = vmul.f32 %v846, 0.2
    %v987 = vmul.f32 %v848, 0.2
    %v988 = vmul.f32 %v691, 0.2
    %v989 = vmul.f32 %v693, 0.2
    %v990 = vmul.f32 %v852, 0.2
    %v991 = vmul.f32 %v854, 0.2
    %v992 = vmul.f32 %v697, 0.2
    %v993 = vmul.f32 %v699, 0.2
    %v994 = vmul.f32 %v858, 0.2
    %v995 = vmul.f32 %v860, 0.2
    %v996 = vmul.f32 %v703, 0.2
    %v997 = vmul.f32 %v705, 0.2
    %v998 = vmul.f32 %v864, 0.2
    %v999 = vmul.f32 %v866, 0.2
    %v1000 = vmul.f32 %v709, 0.2
    %v1001 = vmul.f32 %v711, 0.2
    %v1002 = vmul.f32 %v870, 0.2
    %v1003 = vmul.f32 %v872, 0.2
    %v1004 = vmul.f32 %v715, 0.2
    %v1005 = vmul.f32 %v717, 0.2
    %v1006 = vmul.f32 %v876, 0.2
    %v1007 = vmul.f32 %v878, 0.2
    %v1008 = vsel %vm880, %v625, %v944
    %v1009 = vsel %vm881, %v627, %v945
    %v1010 = vsel %vm882, %v786, %v946
    %v1011 = vsel %vm883, %v788, %v947
    %v1012 = vsel %vm884, %v631, %v948
    %v1013 = vsel %vm885, %v633, %v949
    %v1014 = vsel %vm886, %v792, %v950
    %v1015 = vsel %vm887, %v794, %v951
    %v1016 = vsel %vm888, %v637, %v952
    %v1017 = vsel %vm889, %v639, %v953
    %v1018 = vsel %vm890, %v798, %v954
    %v1019 = vsel %vm891, %v800, %v955
    %v1020 = vsel %vm892, %v643, %v956
    %v1021 = vsel %vm893, %v645, %v957
    %v1022 = vsel %vm894, %v804, %v958
    %v1023 = vsel %vm895, %v806, %v959
    %v1024 = vsel %vm896, %v649, %v960
    %v1025 = vsel %vm897, %v651, %v961
    %v1026 = vsel %vm898, %v810, %v962
    %v1027 = vsel %vm899, %v812, %v963
    %v1028 = vsel %vm900, %v655, %v964
    %v1029 = vsel %vm901, %v657, %v965
    %v1030 = vsel %vm902, %v816, %v966
    %v1031 = vsel %vm903, %v818, %v967
    %v1032 = vsel %vm904, %v661, %v968
    %v1033 = vsel %vm905, %v663, %v969
    %v1034 = vsel %vm906, %v822, %v970
    %v1035 = vsel %vm907, %v824, %v971
    %v1036 = vsel %vm908, %v667, %v972
    %v1037 = vsel %vm909, %v669, %v973
    %v1038 = vsel %vm910, %v828, %v974
    %v1039 = vsel %vm911, %v830, %v975
    %v1040 = vsel %vm912, %v673, %v976
    %v1041 = vsel %vm913, %v675, %v977
    %v1042 = vsel %vm914, %v834, %v978
    %v1043 = vsel %vm915, %v836, %v979
    %v1044 = vsel %vm916, %v679, %v980
    %v1045 = vsel %vm917, %v681, %v981
    %v1046 = vsel %vm918, %v840, %v982
    %v1047 = vsel %vm919, %v842, %v983
    %v1048 = vsel %vm920, %v685, %v984
    %v1049 = vsel %vm921, %v687, %v985
    %v1050 = vsel %vm922, %v846, %v986
    %v1051 = vsel %vm923, %v848, %v987
    %v1052 = vsel %vm924, %v691, %v988
    %v1053 = vsel %vm925, %v693, %v989
    %v1054 = vsel %vm926, %v852, %v990
    %v1055 = vsel %vm927, %v854, %v991
    %v1056 = vsel %vm928, %v697, %v992
    %v1057 = vsel %vm929, %v699, %v993
    %v1058 = vsel %vm930, %v858, %v994
    %v1059 = vsel %vm931, %v860, %v995
    %v1060 = vsel %vm932, %v703, %v996
    %v1061 = vsel %vm933, %v705, %v997
    %v1062 = vsel %vm934, %v864, %v998
    %v1063 = vsel %vm935, %v866, %v999
    %v1064 = vsel %vm936, %v709, %v1000
    %v1065 = vsel %vm937, %v711, %v1001
    %v1066 = vsel %vm938, %v870, %v1002
    %v1067 = vsel %vm939, %v872, %v1003
    %v1068 = vsel %vm940, %v715, %v1004
    %v1069 = vsel %vm941, %v717, %v1005
    %v1070 = vsel %vm942, %v876, %v1006
    %v1071 = vsel %vm943, %v878, %v1007
    %v1072 = vld [vmem:[#allocation6] sm:$0xff]
    %v1073 = vld [vmem:[#allocation6 + $0x8] sm:$0xff]
    %v1074 = vld [vmem:[#allocation6 + $0x10] sm:$0xff]
    %v1075 = vld [vmem:[#allocation6 + $0x18] sm:$0xff]
    %v1076 = vld [vmem:[#allocation6 + $0x20] sm:$0xff]
    %v1077 = vld [vmem:[#allocation6 + $0x28] sm:$0xff]
    %v1078 = vld [vmem:[#allocation6 + $0x30] sm:$0xff]
    %v1079 = vld [vmem:[#allocation6 + $0x38] sm:$0xff]
    %v1080 = vld [vmem:[#allocation6 + $0x40] sm:$0xff]
    %v1081 = vld [vmem:[#allocation6 + $0x48] sm:$0xff]
    %v1082 = vld [vmem:[#allocation6 + $0x50] sm:$0xff]
    %v1083 = vld [vmem:[#allocation6 + $0x58] sm:$0xff]
    %v1084 = vld [vmem:[#allocation6 + $0x60] sm:$0xff]
    %v1085 = vld [vmem:[#allocation6 + $0x68] sm:$0xff]
    %v1086 = vld [vmem:[#allocation6 + $0x70] sm:$0xff]
    %v1087 = vld [vmem:[#allocation6 + $0x78] sm:$0xff]
    %v1088 = vld [vmem:[#allocation6 + $0x80] sm:$0xff]
    %v1089 = vld [vmem:[#allocation6 + $0x88] sm:$0xff]
    %v1090 = vld [vmem:[#allocation6 + $0x90] sm:$0xff]
    %v1091 = vld [vmem:[#allocation6 + $0x98] sm:$0xff]
    %v1092 = vld [vmem:[#allocation6 + $0xa0] sm:$0xff]
    %v1093 = vld [vmem:[#allocation6 + $0xa8] sm:$0xff]
    %v1094 = vld [vmem:[#allocation6 + $0xb0] sm:$0xff]
    %v1095 = vld [vmem:[#allocation6 + $0xb8] sm:$0xff]
    %v1096 = vld [vmem:[#allocation6 + $0xc0] sm:$0xff]
    %v1097 = vld [vmem:[#allocation6 + $0xc8] sm:$0xff]
    %v1098 = vld [vmem:[#allocation6 + $0xd0] sm:$0xff]
    %v1099 = vld [vmem:[#allocation6 + $0xd8] sm:$0xff]
    %v1100 = vld [vmem:[#allocation6 + $0xe0] sm:$0xff]
    %v1101 = vld [vmem:[#allocation6 + $0xe8] sm:$0xff]
    %v1102 = vld [vmem:[#allocation6 + $0xf0] sm:$0xff]
    %v1103 = vld [vmem:[#allocation6 + $0xf8] sm:$0xff]
    %v1104 = vld [vmem:[#allocation6 + $0x100] sm:$0xff]
    %v1105 = vld [vmem:[#allocation6 + $0x108] sm:$0xff]
    %v1106 = vld [vmem:[#allocation6 + $0x110] sm:$0xff]
    %v1107 = vld [vmem:[#allocation6 + $0x118] sm:$0xff]
    %v1108 = vld [vmem:[#allocation6 + $0x120] sm:$0xff]
    %v1109 = vld [vmem:[#allocation6 + $0x128] sm:$0xff]
    %v1110 = vld [vmem:[#allocation6 + $0x130] sm:$0xff]
    %v1111 = vld [vmem:[#allocation6 + $0x138] sm:$0xff]
    %v1112 = vld [vmem:[#allocation6 + $0x140] sm:$0xff]
    %v1113 = vld [vmem:[#allocation6 + $0x148] sm:$0xff]
    %v1114 = vld [vmem:[#allocation6 + $0x150] sm:$0xff]
    %v1115 = vld [vmem:[#allocation6 + $0x158] sm:$0xff]
    %v1116 = vld [vmem:[#allocation6 + $0x160] sm:$0xff]
    %v1117 = vld [vmem:[#allocation6 + $0x168] sm:$0xff]
    %v1118 = vld [vmem:[#allocation6 + $0x170] sm:$0xff]
    %v1119 = vld [vmem:[#allocation6 + $0x178] sm:$0xff]
    %v1120 = vld [vmem:[#allocation6 + $0x180] sm:$0xff]
    %v1121 = vld [vmem:[#allocation6 + $0x188] sm:$0xff]
    %v1122 = vld [vmem:[#allocation6 + $0x190] sm:$0xff]
    %v1123 = vld [vmem:[#allocation6 + $0x198] sm:$0xff]
    %v1124 = vld [vmem:[#allocation6 + $0x1a0] sm:$0xff]
    %v1125 = vld [vmem:[#allocation6 + $0x1a8] sm:$0xff]
    %v1126 = vld [vmem:[#allocation6 + $0x1b0] sm:$0xff]
    %v1127 = vld [vmem:[#allocation6 + $0x1b8] sm:$0xff]
    %v1128 = vld [vmem:[#allocation6 + $0x1c0] sm:$0xff]
    %v1129 = vld [vmem:[#allocation6 + $0x1c8] sm:$0xff]
    %v1130 = vld [vmem:[#allocation6 + $0x1d0] sm:$0xff]
    %v1131 = vld [vmem:[#allocation6 + $0x1d8] sm:$0xff]
    %v1132 = vld [vmem:[#allocation6 + $0x1e0] sm:$0xff]
    %v1133 = vld [vmem:[#allocation6 + $0x1e8] sm:$0xff]
    %v1134 = vld [vmem:[#allocation6 + $0x1f0] sm:$0xff]
    %v1135 = vld [vmem:[#allocation6 + $0x1f8] sm:$0xff]
    %v1136 = vld [vmem:[#allocation6 + $0x200] sm:$0xff]
    %v1137 = vld [vmem:[#allocation6 + $0x208] sm:$0xff]
    %v1138 = vld [vmem:[#allocation6 + $0x210] sm:$0xff]
    %v1139 = vld [vmem:[#allocation6 + $0x218] sm:$0xff]
    %v1140 = vld [vmem:[#allocation6 + $0x220] sm:$0xff]
    %v1141 = vld [vmem:[#allocation6 + $0x228] sm:$0xff]
    %v1142 = vld [vmem:[#allocation6 + $0x230] sm:$0xff]
    %v1143 = vld [vmem:[#allocation6 + $0x238] sm:$0xff]
    %v1144 = vld [vmem:[#allocation6 + $0x240] sm:$0xff]
    %v1145 = vld [vmem:[#allocation6 + $0x248] sm:$0xff]
    %v1146 = vld [vmem:[#allocation6 + $0x250] sm:$0xff]
    %v1147 = vld [vmem:[#allocation6 + $0x258] sm:$0xff]
    %v1148 = vld [vmem:[#allocation6 + $0x260] sm:$0xff]
    %v1149 = vld [vmem:[#allocation6 + $0x268] sm:$0xff]
    %v1150 = vld [vmem:[#allocation6 + $0x270] sm:$0xff]
    %v1151 = vld [vmem:[#allocation6 + $0x278] sm:$0xff]
    %v1152 = vld [vmem:[#allocation6 + $0x280] sm:$0xff]
    %v1153 = vld [vmem:[#allocation6 + $0x288] sm:$0xff]
    %v1154 = vld [vmem:[#allocation6 + $0x290] sm:$0xff]
    %v1155 = vld [vmem:[#allocation6 + $0x298] sm:$0xff]
    %v1156 = vld [vmem:[#allocation6 + $0x2a0] sm:$0xff]
    %v1157 = vld [vmem:[#allocation6 + $0x2a8] sm:$0xff]
    %v1158 = vld [vmem:[#allocation6 + $0x2b0] sm:$0xff]
    %v1159 = vld [vmem:[#allocation6 + $0x2b8] sm:$0xff]
    %v1160 = vld [vmem:[#allocation6 + $0x2c0] sm:$0xff]
    %v1161 = vld [vmem:[#allocation6 + $0x2c8] sm:$0xff]
    %v1162 = vld [vmem:[#allocation6 + $0x2d0] sm:$0xff]
    %v1163 = vld [vmem:[#allocation6 + $0x2d8] sm:$0xff]
    %v1164 = vld [vmem:[#allocation6 + $0x2e0] sm:$0xff]
    %v1165 = vld [vmem:[#allocation6 + $0x2e8] sm:$0xff]
    %v1166 = vld [vmem:[#allocation6 + $0x2f0] sm:$0xff]
    %v1167 = vld [vmem:[#allocation6 + $0x2f8] sm:$0xff]
    %v1168 = vld [vmem:[#allocation6 + $0x300] sm:$0xff]
    %v1169 = vld [vmem:[#allocation6 + $0x308] sm:$0xff]
    %v1170 = vld [vmem:[#allocation6 + $0x310] sm:$0xff]
    %v1171 = vld [vmem:[#allocation6 + $0x318] sm:$0xff]
    %v1172 = vld [vmem:[#allocation6 + $0x320] sm:$0xff]
    %v1173 = vld [vmem:[#allocation6 + $0x328] sm:$0xff]
    %v1174 = vld [vmem:[#allocation6 + $0x330] sm:$0xff]
    %v1175 = vld [vmem:[#allocation6 + $0x338] sm:$0xff]
    %v1176 = vld [vmem:[#allocation6 + $0x340] sm:$0xff]
    %v1177 = vld [vmem:[#allocation6 + $0x348] sm:$0xff]
    %v1178 = vld [vmem:[#allocation6 + $0x350] sm:$0xff]
    %v1179 = vld [vmem:[#allocation6 + $0x358] sm:$0xff]
    %v1180 = vld [vmem:[#allocation6 + $0x360] sm:$0xff]
    %v1181 = vld [vmem:[#allocation6 + $0x368] sm:$0xff]
    %v1182 = vld [vmem:[#allocation6 + $0x370] sm:$0xff]
    %v1183 = vld [vmem:[#allocation6 + $0x378] sm:$0xff]
    %v1184 = vld [vmem:[#allocation6 + $0x380] sm:$0xff]
    %v1185 = vld [vmem:[#allocation6 + $0x388] sm:$0xff]
    %v1186 = vld [vmem:[#allocation6 + $0x390] sm:$0xff]
    %v1187 = vld [vmem:[#allocation6 + $0x398] sm:$0xff]
    %v1188 = vld [vmem:[#allocation6 + $0x3a0] sm:$0xff]
    %v1189 = vld [vmem:[#allocation6 + $0x3a8] sm:$0xff]
    %v1190 = vld [vmem:[#allocation6 + $0x3b0] sm:$0xff]
    %v1191 = vld [vmem:[#allocation6 + $0x3b8] sm:$0xff]
    %v1192 = vld [vmem:[#allocation6 + $0x3c0] sm:$0xff]
    %v1193 = vld [vmem:[#allocation6 + $0x3c8] sm:$0xff]
    %v1194 = vld [vmem:[#allocation6 + $0x3d0] sm:$0xff]
    %v1195 = vld [vmem:[#allocation6 + $0x3d8] sm:$0xff]
    %v1196 = vld [vmem:[#allocation6 + $0x3e0] sm:$0xff]
    %v1197 = vld [vmem:[#allocation6 + $0x3e8] sm:$0xff]
    %v1198 = vld [vmem:[#allocation6 + $0x3f0] sm:$0xff]
    %v1199 = vld [vmem:[#allocation6 + $0x3f8] sm:$0xff]
    %v1200 = vld [vmem:[%s6] sm:$0x3]
    %v1202 = vlaneseq
    %v1203 = vshrl.u32 %v1202, 7
    %v1204 = vsub.s32 0, %v1203
    %v1205 = vrot.slane %v1200, %v1204
    %v1206 = vlaneseq
    %v1207 = vshrl.u32 %v1206, 7
    %v1208 = vsub.s32 1, %v1207
    %v1209 = vrot.slane %v1200, %v1208
    %1212 = vmatprep.subr.mxu0 %v1103
    %1213 = vmatpush1.msra.mxu0 %v1102
    %1214 = vmatprep.subr.mxu0 %v1101
    %1215 = vmatpush1.msra.mxu0 %v1100
    %1216 = vmatprep.subr.mxu0 %v1099
    %1217 = vmatpush1.msra.mxu0 %v1098
    %1218 = vmatprep.subr.mxu0 %v1097
    %1219 = vmatpush1.msra.mxu0 %v1096
    %1220 = vmatprep.subr.mxu0 %v1095
    %1221 = vmatpush1.msra.mxu0 %v1094
    %1222 = vmatprep.subr.mxu0 %v1093
    %1223 = vmatpush1.msra.mxu0 %v1092
    %1224 = vmatprep.subr.mxu0 %v1091
    %1225 = vmatpush1.msra.mxu0 %v1090
    %1226 = vmatprep.subr.mxu0 %v1089
    %1227 = vmatpush1.msra.mxu0 %v1088
    %1228 = vmatprep.subr.mxu0 %v1087
    %1229 = vmatpush1.msra.mxu0 %v1086
    %1230 = vmatprep.subr.mxu0 %v1085
    %1231 = vmatpush1.msra.mxu0 %v1084
    %1232 = vmatprep.subr.mxu0 %v1083
    %1233 = vmatpush1.msra.mxu0 %v1082
    %1234 = vmatprep.subr.mxu0 %v1081
    %1235 = vmatpush1.msra.mxu0 %v1080
    %1236 = vmatprep.subr.mxu0 %v1079
    %1237 = vmatpush1.msra.mxu0 %v1078
    %1238 = vmatprep.subr.mxu0 %v1077
    %1239 = vmatpush1.msra.mxu0 %v1076
    %1240 = vmatprep.subr.mxu0 %v1075
    %1241 = vmatpush1.msra.mxu0 %v1074
    %1242 = vmatprep.subr.mxu0 %v1073
    %1243 = vmatpush1.msra.mxu0 %v1072
    %1244 = vmatprep.subr.mxu0 %v1135
    %1245 = vmatpush2.msra.mxu0 %v1134
    %1246 = vmatprep.subr.mxu0 %v1133
    %1247 = vmatpush2.msra.mxu0 %v1132
    %1248 = vmatprep.subr.mxu0 %v1131
    %1249 = vmatpush2.msra.mxu0 %v1130
    %1250 = vmatprep.subr.mxu0 %v1129
    %1251 = vmatpush2.msra.mxu0 %v1128
    %1252 = vmatprep.subr.mxu0 %v1127
    %1253 = vmatpush2.msra.mxu0 %v1126
    %1254 = vmatprep.subr.mxu0 %v1125
    %1255 = vmatpush2.msra.mxu0 %v1124
    %1256 = vmatprep.subr.mxu0 %v1123
    %1257 = vmatpush2.msra.mxu0 %v1122
    %1258 = vmatprep.subr.mxu0 %v1121
    %1259 = vmatpush2.msra.mxu0 %v1120
    %1260 = vmatprep.subr.mxu0 %v1119
    %1261 = vmatpush2.msra.mxu0 %v1118
    %1262 = vmatprep.subr.mxu0 %v1117
    %1263 = vmatpush2.msra.mxu0 %v1116
    %1264 = vmatprep.subr.mxu0 %v1115
    %1265 = vmatpush2.msra.mxu0 %v1114
    %1266 = vmatprep.subr.mxu0 %v1113
    %1267 = vmatpush2.msra.mxu0 %v1112
    %1268 = vmatprep.subr.mxu0 %v1111
    %1269 = vmatpush2.msra.mxu0 %v1110
    %1270 = vmatprep.subr.mxu0 %v1109
    %1271 = vmatpush2.msra.mxu0 %v1108
    %1272 = vmatprep.subr.mxu0 %v1107
    %1273 = vmatpush2.msra.mxu0 %v1106
    %1274 = vmatprep.subr.mxu0 %v1105
    %1275 = vmatpush2.msra.mxu0 %v1104
    %1276 = vmatprep.mubr.f32.mxu0 %v1009
    %1277 = vmatmul.mubr.f32.gmra.mxu0 %v1008
    %v1278 = vpop.f32.mrf.mxu0
    %v1279 = vadd.f32 %v1205, %v1278
    %v1280 = vpop.f32.mrf.mxu0
    %v1281 = vadd.f32 %v1209, %v1280
    %1282 = vmatprep.mubr.f32.mxu0 %v1013
    %1283 = vmatmul.mubr.f32.gmra.mxu0 %v1012
    %v1284 = vpop.f32.mrf.mxu0
    %v1285 = vadd.f32 %v1205, %v1284
    %v1286 = vpop.f32.mrf.mxu0
    %v1287 = vadd.f32 %v1209, %v1286
    %1288 = vmatprep.mubr.f32.mxu0 %v1017
    %1289 = vmatmul.mubr.f32.gmra.mxu0 %v1016
    %v1290 = vpop.f32.mrf.mxu0
    %v1291 = vadd.f32 %v1205, %v1290
    %v1292 = vpop.f32.mrf.mxu0
    %v1293 = vadd.f32 %v1209, %v1292
    %1294 = vmatprep.mubr.f32.mxu0 %v1021
    %1295 = vmatmul.mubr.f32.gmra.mxu0 %v1020
    %v1296 = vpop.f32.mrf.mxu0
    %v1297 = vadd.f32 %v1205, %v1296
    %v1298 = vpop.f32.mrf.mxu0
    %v1299 = vadd.f32 %v1209, %v1298
    %1300 = vmatprep.mubr.f32.mxu0 %v1025
    %1301 = vmatmul.mubr.f32.gmra.mxu0 %v1024
    %v1302 = vpop.f32.mrf.mxu0
    %v1303 = vadd.f32 %v1205, %v1302
    %v1304 = vpop.f32.mrf.mxu0
    %v1305 = vadd.f32 %v1209, %v1304
    %1306 = vmatprep.mubr.f32.mxu0 %v1029
    %1307 = vmatmul.mubr.f32.gmra.mxu0 %v1028
    %v1308 = vpop.f32.mrf.mxu0
    %v1309 = vadd.f32 %v1205, %v1308
    %v1310 = vpop.f32.mrf.mxu0
    %v1311 = vadd.f32 %v1209, %v1310
    %1312 = vmatprep.mubr.f32.mxu0 %v1033
    %1313 = vmatmul.mubr.f32.gmra.mxu0 %v1032
    %v1314 = vpop.f32.mrf.mxu0
    %v1315 = vadd.f32 %v1205, %v1314
    %v1316 = vpop.f32.mrf.mxu0
    %v1317 = vadd.f32 %v1209, %v1316
    %1318 = vmatprep.mubr.f32.mxu0 %v1037
    %1319 = vmatmul.mubr.f32.gmra.mxu0 %v1036
    %v1320 = vpop.f32.mrf.mxu0
    %v1321 = vadd.f32 %v1205, %v1320
    %v1322 = vpop.f32.mrf.mxu0
    %v1323 = vadd.f32 %v1209, %v1322
    %1324 = vmatprep.mubr.f32.mxu0 %v1041
    %1325 = vmatmul.mubr.f32.gmra.mxu0 %v1040
    %v1326 = vpop.f32.mrf.mxu0
    %v1327 = vadd.f32 %v1205, %v1326
    %v1328 = vpop.f32.mrf.mxu0
    %v1329 = vadd.f32 %v1209, %v1328
    %1330 = vmatprep.mubr.f32.mxu0 %v1045
    %1331 = vmatmul.mubr.f32.gmra.mxu0 %v1044
    %v1332 = vpop.f32.mrf.mxu0
    %v1333 = vadd.f32 %v1205, %v1332
    %v1334 = vpop.f32.mrf.mxu0
    %v1335 = vadd.f32 %v1209, %v1334
    %1336 = vmatprep.mubr.f32.mxu0 %v1049
    %1337 = vmatmul.mubr.f32.gmra.mxu0 %v1048
    %v1338 = vpop.f32.mrf.mxu0
    %v1339 = vadd.f32 %v1205, %v1338
    %v1340 = vpop.f32.mrf.mxu0
    %v1341 = vadd.f32 %v1209, %v1340
    %1342 = vmatprep.mubr.f32.mxu0 %v1053
    %1343 = vmatmul.mubr.f32.gmra.mxu0 %v1052
    %v1344 = vpop.f32.mrf.mxu0
    %v1345 = vadd.f32 %v1205, %v1344
    %v1346 = vpop.f32.mrf.mxu0
    %v1347 = vadd.f32 %v1209, %v1346
    %1348 = vmatprep.mubr.f32.mxu0 %v1057
    %1349 = vmatmul.mubr.f32.gmra.mxu0 %v1056
    %v1350 = vpop.f32.mrf.mxu0
    %v1351 = vadd.f32 %v1205, %v1350
    %v1352 = vpop.f32.mrf.mxu0
    %v1353 = vadd.f32 %v1209, %v1352
    %1354 = vmatprep.mubr.f32.mxu0 %v1061
    %1355 = vmatmul.mubr.f32.gmra.mxu0 %v1060
    %v1356 = vpop.f32.mrf.mxu0
    %v1357 = vadd.f32 %v1205, %v1356
    %v1358 = vpop.f32.mrf.mxu0
    %v1359 = vadd.f32 %v1209, %v1358
    %1360 = vmatprep.mubr.f32.mxu0 %v1065
    %1361 = vmatmul.mubr.f32.gmra.mxu0 %v1064
    %v1362 = vpop.f32.mrf.mxu0
    %v1363 = vadd.f32 %v1205, %v1362
    %v1364 = vpop.f32.mrf.mxu0
    %v1365 = vadd.f32 %v1209, %v1364
    %1366 = vmatprep.mubr.f32.mxu0 %v1069
    %1367 = vmatmul.mubr.f32.gmra.mxu0 %v1068
    %v1368 = vpop.f32.mrf.mxu0
    %v1369 = vadd.f32 %v1205, %v1368
    %v1370 = vpop.f32.mrf.mxu0
    %v1371 = vadd.f32 %v1209, %v1370
    %1372 = vdwg.mxu0
    %1373 = vmatprep.subr.mxu0 %v1167
    %1374 = vmatpush1.msra.mxu0 %v1166
    %1375 = vmatprep.subr.mxu0 %v1165
    %1376 = vmatpush1.msra.mxu0 %v1164
    %1377 = vmatprep.subr.mxu0 %v1163
    %1378 = vmatpush1.msra.mxu0 %v1162
    %1379 = vmatprep.subr.mxu0 %v1161
    %1380 = vmatpush1.msra.mxu0 %v1160
    %1381 = vmatprep.subr.mxu0 %v1159
    %1382 = vmatpush1.msra.mxu0 %v1158
    %1383 = vmatprep.subr.mxu0 %v1157
    %1384 = vmatpush1.msra.mxu0 %v1156
    %1385 = vmatprep.subr.mxu0 %v1155
    %1386 = vmatpush1.msra.mxu0 %v1154
    %1387 = vmatprep.subr.mxu0 %v1153
    %1388 = vmatpush1.msra.mxu0 %v1152
    %1389 = vmatprep.subr.mxu0 %v1151
    %1390 = vmatpush1.msra.mxu0 %v1150
    %1391 = vmatprep.subr.mxu0 %v1149
    %1392 = vmatpush1.msra.mxu0 %v1148
    %1393 = vmatprep.subr.mxu0 %v1147
    %1394 = vmatpush1.msra.mxu0 %v1146
    %1395 = vmatprep.subr.mxu0 %v1145
    %1396 = vmatpush1.msra.mxu0 %v1144
    %1397 = vmatprep.subr.mxu0 %v1143
    %1398 = vmatpush1.msra.mxu0 %v1142
    %1399 = vmatprep.subr.mxu0 %v1141
    %1400 = vmatpush1.msra.mxu0 %v1140
    %1401 = vmatprep.subr.mxu0 %v1139
    %1402 = vmatpush1.msra.mxu0 %v1138
    %1403 = vmatprep.subr.mxu0 %v1137
    %1404 = vmatpush1.msra.mxu0 %v1136
    %1405 = vmatprep.subr.mxu0 %v1199
    %1406 = vmatpush2.msra.mxu0 %v1198
    %1407 = vmatprep.subr.mxu0 %v1197
    %1408 = vmatpush2.msra.mxu0 %v1196
    %1409 = vmatprep.subr.mxu0 %v1195
    %1410 = vmatpush2.msra.mxu0 %v1194
    %1411 = vmatprep.subr.mxu0 %v1193
    %1412 = vmatpush2.msra.mxu0 %v1192
    %1413 = vmatprep.subr.mxu0 %v1191
    %1414 = vmatpush2.msra.mxu0 %v1190
    %1415 = vmatprep.subr.mxu0 %v1189
    %1416 = vmatpush2.msra.mxu0 %v1188
    %1417 = vmatprep.subr.mxu0 %v1187
    %1418 = vmatpush2.msra.mxu0 %v1186
    %1419 = vmatprep.subr.mxu0 %v1185
    %1420 = vmatpush2.msra.mxu0 %v1184
    %1421 = vmatprep.subr.mxu0 %v1183
    %1422 = vmatpush2.msra.mxu0 %v1182
    %1423 = vmatprep.subr.mxu0 %v1181
    %1424 = vmatpush2.msra.mxu0 %v1180
    %1425 = vmatprep.subr.mxu0 %v1179
    %1426 = vmatpush2.msra.mxu0 %v1178
    %1427 = vmatprep.subr.mxu0 %v1177
    %1428 = vmatpush2.msra.mxu0 %v1176
    %1429 = vmatprep.subr.mxu0 %v1175
    %1430 = vmatpush2.msra.mxu0 %v1174
    %1431 = vmatprep.subr.mxu0 %v1173
    %1432 = vmatpush2.msra.mxu0 %v1172
    %1433 = vmatprep.subr.mxu0 %v1171
    %1434 = vmatpush2.msra.mxu0 %v1170
    %1435 = vmatprep.subr.mxu0 %v1169
    %1436 = vmatpush2.msra.mxu0 %v1168
    %1437 = vmatprep.mubr.f32.mxu0 %v1011
    %1438 = vmatmul.mubr.f32.gmra.mxu0 %v1010
    %v1439 = vpop.f32.mrf.mxu0
    %v1440 = vadd.f32 %v1279, %v1439
    %v1441 = vpop.f32.mrf.mxu0
    %v1442 = vadd.f32 %v1281, %v1441
    %1443 = vmatprep.mubr.f32.mxu0 %v1015
    %1444 = vmatmul.mubr.f32.gmra.mxu0 %v1014
    %v1445 = vpop.f32.mrf.mxu0
    %v1446 = vadd.f32 %v1285, %v1445
    %v1447 = vpop.f32.mrf.mxu0
    %v1448 = vadd.f32 %v1287, %v1447
    %1449 = vmatprep.mubr.f32.mxu0 %v1019
    %1450 = vmatmul.mubr.f32.gmra.mxu0 %v1018
    %v1451 = vpop.f32.mrf.mxu0
    %v1452 = vadd.f32 %v1291, %v1451
    %v1453 = vpop.f32.mrf.mxu0
    %v1454 = vadd.f32 %v1293, %v1453
    %1455 = vmatprep.mubr.f32.mxu0 %v1023
    %1456 = vmatmul.mubr.f32.gmra.mxu0 %v1022
    %v1457 = vpop.f32.mrf.mxu0
    %v1458 = vadd.f32 %v1297, %v1457
    %v1459 = vpop.f32.mrf.mxu0
    %v1460 = vadd.f32 %v1299, %v1459
    %1461 = vmatprep.mubr.f32.mxu0 %v1027
    %1462 = vmatmul.mubr.f32.gmra.mxu0 %v1026
    %v1463 = vpop.f32.mrf.mxu0
    %v1464 = vadd.f32 %v1303, %v1463
    %v1465 = vpop.f32.mrf.mxu0
    %v1466 = vadd.f32 %v1305, %v1465
    %1467 = vmatprep.mubr.f32.mxu0 %v1031
    %1468 = vmatmul.mubr.f32.gmra.mxu0 %v1030
    %v1469 = vpop.f32.mrf.mxu0
    %v1470 = vadd.f32 %v1309, %v1469
    %v1471 = vpop.f32.mrf.mxu0
    %v1472 = vadd.f32 %v1311, %v1471
    %1473 = vmatprep.mubr.f32.mxu0 %v1035
    %1474 = vmatmul.mubr.f32.gmra.mxu0 %v1034
    %v1475 = vpop.f32.mrf.mxu0
    %v1476 = vadd.f32 %v1315, %v1475
    %v1477 = vpop.f32.mrf.mxu0
    %v1478 = vadd.f32 %v1317, %v1477
    %1479 = vmatprep.mubr.f32.mxu0 %v1039
    %1480 = vmatmul.mubr.f32.gmra.mxu0 %v1038
    %v1481 = vpop.f32.mrf.mxu0
    %v1482 = vadd.f32 %v1321, %v1481
    %v1483 = vpop.f32.mrf.mxu0
    %v1484 = vadd.f32 %v1323, %v1483
    %1485 = vmatprep.mubr.f32.mxu0 %v1043
    %1486 = vmatmul.mubr.f32.gmra.mxu0 %v1042
    %v1487 = vpop.f32.mrf.mxu0
    %v1488 = vadd.f32 %v1327, %v1487
    %v1489 = vpop.f32.mrf.mxu0
    %v1490 = vadd.f32 %v1329, %v1489
    %1491 = vmatprep.mubr.f32.mxu0 %v1047
    %1492 = vmatmul.mubr.f32.gmra.mxu0 %v1046
    %v1493 = vpop.f32.mrf.mxu0
    %v1494 = vadd.f32 %v1333, %v1493
    %v1495 = vpop.f32.mrf.mxu0
    %v1496 = vadd.f32 %v1335, %v1495
    %1497 = vmatprep.mubr.f32.mxu0 %v1051
    %1498 = vmatmul.mubr.f32.gmra.mxu0 %v1050
    %v1499 = vpop.f32.mrf.mxu0
    %v1500 = vadd.f32 %v1339, %v1499
    %v1501 = vpop.f32.mrf.mxu0
    %v1502 = vadd.f32 %v1341, %v1501
    %1503 = vmatprep.mubr.f32.mxu0 %v1055
    %1504 = vmatmul.mubr.f32.gmra.mxu0 %v1054
    %v1505 = vpop.f32.mrf.mxu0
    %v1506 = vadd.f32 %v1345, %v1505
    %v1507 = vpop.f32.mrf.mxu0
    %v1508 = vadd.f32 %v1347, %v1507
    %1509 = vmatprep.mubr.f32.mxu0 %v1059
    %1510 = vmatmul.mubr.f32.gmra.mxu0 %v1058
    %v1511 = vpop.f32.mrf.mxu0
    %v1512 = vadd.f32 %v1351, %v1511
    %v1513 = vpop.f32.mrf.mxu0
    %v1514 = vadd.f32 %v1353, %v1513
    %1515 = vmatprep.mubr.f32.mxu0 %v1063
    %1516 = vmatmul.mubr.f32.gmra.mxu0 %v1062
    %v1517 = vpop.f32.mrf.mxu0
    %v1518 = vadd.f32 %v1357, %v1517
    %v1519 = vpop.f32.mrf.mxu0
    %v1520 = vadd.f32 %v1359, %v1519
    %1521 = vmatprep.mubr.f32.mxu0 %v1067
    %1522 = vmatmul.mubr.f32.gmra.mxu0 %v1066
    %v1523 = vpop.f32.mrf.mxu0
    %v1524 = vadd.f32 %v1363, %v1523
    %v1525 = vpop.f32.mrf.mxu0
    %v1526 = vadd.f32 %v1365, %v1525
    %1527 = vmatprep.mubr.f32.mxu0 %v1071
    %1528 = vmatmul.mubr.f32.gmra.mxu0 %v1070
    %v1529 = vpop.f32.mrf.mxu0
    %v1530 = vadd.f32 %v1369, %v1529
    %v1531 = vpop.f32.mrf.mxu0
    %v1532 = vadd.f32 %v1371, %v1531
    %1533 = vdwg.mxu0
    %vm1534 = vcmp.gt.f32.partialorder %v1440, 0.0
    %vm1535 = vcmp.gt.f32.partialorder %v1442, 0.0
    %vm1536 = vcmp.gt.f32.partialorder %v1446, 0.0
    %vm1537 = vcmp.gt.f32.partialorder %v1448, 0.0
    %vm1538 = vcmp.gt.f32.partialorder %v1452, 0.0
    %vm1539 = vcmp.gt.f32.partialorder %v1454, 0.0
    %vm1540 = vcmp.gt.f32.partialorder %v1458, 0.0
    %vm1541 = vcmp.gt.f32.partialorder %v1460, 0.0
    %vm1542 = vcmp.gt.f32.partialorder %v1464, 0.0
    %vm1543 = vcmp.gt.f32.partialorder %v1466, 0.0
    %vm1544 = vcmp.gt.f32.partialorder %v1470, 0.0
    %vm1545 = vcmp.gt.f32.partialorder %v1472, 0.0
    %vm1546 = vcmp.gt.f32.partialorder %v1476, 0.0
    %vm1547 = vcmp.gt.f32.partialorder %v1478, 0.0
    %vm1548 = vcmp.gt.f32.partialorder %v1482, 0.0
    %vm1549 = vcmp.gt.f32.partialorder %v1484, 0.0
    %vm1550 = vcmp.gt.f32.partialorder %v1488, 0.0
    %vm1551 = vcmp.gt.f32.partialorder %v1490, 0.0
    %vm1552 = vcmp.gt.f32.partialorder %v1494, 0.0
    %vm1553 = vcmp.gt.f32.partialorder %v1496, 0.0
    %vm1554 = vcmp.gt.f32.partialorder %v1500, 0.0
    %vm1555 = vcmp.gt.f32.partialorder %v1502, 0.0
    %vm1556 = vcmp.gt.f32.partialorder %v1506, 0.0
    %vm1557 = vcmp.gt.f32.partialorder %v1508, 0.0
    %vm1558 = vcmp.gt.f32.partialorder %v1512, 0.0
    %vm1559 = vcmp.gt.f32.partialorder %v1514, 0.0
    %vm1560 = vcmp.gt.f32.partialorder %v1518, 0.0
    %vm1561 = vcmp.gt.f32.partialorder %v1520, 0.0
    %vm1562 = vcmp.gt.f32.partialorder %v1524, 0.0
    %vm1563 = vcmp.gt.f32.partialorder %v1526, 0.0
    %vm1564 = vcmp.gt.f32.partialorder %v1530, 0.0
    %vm1565 = vcmp.gt.f32.partialorder %v1532, 0.0
    %v1566 = vmul.f32 %v1440, 0.2
    %v1567 = vmul.f32 %v1442, 0.2
    %v1568 = vmul.f32 %v1446, 0.2
    %v1569 = vmul.f32 %v1448, 0.2
    %v1570 = vmul.f32 %v1452, 0.2
    %v1571 = vmul.f32 %v1454, 0.2
    %v1572 = vmul.f32 %v1458, 0.2
    %v1573 = vmul.f32 %v1460, 0.2
    %v1574 = vmul.f32 %v1464, 0.2
    %v1575 = vmul.f32 %v1466, 0.2
    %v1576 = vmul.f32 %v1470, 0.2
    %v1577 = vmul.f32 %v1472, 0.2
    %v1578 = vmul.f32 %v1476, 0.2
    %v1579 = vmul.f32 %v1478, 0.2
    %v1580 = vmul.f32 %v1482, 0.2
    %v1581 = vmul.f32 %v1484, 0.2
    %v1582 = vmul.f32 %v1488, 0.2
    %v1583 = vmul.f32 %v1490, 0.2
    %v1584 = vmul.f32 %v1494, 0.2
    %v1585 = vmul.f32 %v1496, 0.2
    %v1586 = vmul.f32 %v1500, 0.2
    %v1587 = vmul.f32 %v1502, 0.2
    %v1588 = vmul.f32 %v1506, 0.2
    %v1589 = vmul.f32 %v1508, 0.2
    %v1590 = vmul.f32 %v1512, 0.2
    %v1591 = vmul.f32 %v1514, 0.2
    %v1592 = vmul.f32 %v1518, 0.2
    %v1593 = vmul.f32 %v1520, 0.2
    %v1594 = vmul.f32 %v1524, 0.2
    %v1595 = vmul.f32 %v1526, 0.2
    %v1596 = vmul.f32 %v1530, 0.2
    %v1597 = vmul.f32 %v1532, 0.2
    %v1598 = vsel %vm1534, %v1440, %v1566
    %v1599 = vsel %vm1535, %v1442, %v1567
    %v1600 = vsel %vm1536, %v1446, %v1568
    %v1601 = vsel %vm1537, %v1448, %v1569
    %v1602 = vsel %vm1538, %v1452, %v1570
    %v1603 = vsel %vm1539, %v1454, %v1571
    %v1604 = vsel %vm1540, %v1458, %v1572
    %v1605 = vsel %vm1541, %v1460, %v1573
    %v1606 = vsel %vm1542, %v1464, %v1574
    %v1607 = vsel %vm1543, %v1466, %v1575
    %v1608 = vsel %vm1544, %v1470, %v1576
    %v1609 = vsel %vm1545, %v1472, %v1577
    %v1610 = vsel %vm1546, %v1476, %v1578
    %v1611 = vsel %vm1547, %v1478, %v1579
    %v1612 = vsel %vm1548, %v1482, %v1580
    %v1613 = vsel %vm1549, %v1484, %v1581
    %v1614 = vsel %vm1550, %v1488, %v1582
    %v1615 = vsel %vm1551, %v1490, %v1583
    %v1616 = vsel %vm1552, %v1494, %v1584
    %v1617 = vsel %vm1553, %v1496, %v1585
    %v1618 = vsel %vm1554, %v1500, %v1586
    %v1619 = vsel %vm1555, %v1502, %v1587
    %v1620 = vsel %vm1556, %v1506, %v1588
    %v1621 = vsel %vm1557, %v1508, %v1589
    %v1622 = vsel %vm1558, %v1512, %v1590
    %v1623 = vsel %vm1559, %v1514, %v1591
    %v1624 = vsel %vm1560, %v1518, %v1592
    %v1625 = vsel %vm1561, %v1520, %v1593
    %v1626 = vsel %vm1562, %v1524, %v1594
    %v1627 = vsel %vm1563, %v1526, %v1595
    %v1628 = vsel %vm1564, %v1530, %v1596
    %v1629 = vsel %vm1565, %v1532, %v1597
    %v1630 = vld [vmem:[%s7] sm:$0x3]
    %v1631 = vld [vmem:[#allocation2] sm:$0x1]
    %1633 = vset.pattern.permute.xlu0 0
    %1634 = vperm.xlu0 %1633, %v1631
    %v1635 = vpop.permute.xlu0 %1634
    %v1637 = vlaneseq
    %v1638 = vshrl.u32 %v1637, 7
    %v1639 = vsub.s32 0, %v1638
    %v1640 = vrot.slane %v1635, %v1639
    %v1642 = vlaneseq
    %v1643 = vshrl.u32 %v1642, 7
    %v1644 = vsub.s32 0, %v1643
    %v1645 = vrot.slane %v1630, %v1644
    %v1646 = vlaneseq
    %v1647 = vshrl.u32 %v1646, 7
    %v1648 = vsub.s32 1, %v1647
    %v1649 = vrot.slane %v1630, %v1648
    %1652 = vmatprep.subr.mxu0 %v1629
    %1653 = vmatpush1.xpose.msra.mxu0 %v1628
    %1654 = vmatprep.subr.mxu0 %v1627
    %1655 = vmatpush1.xpose.msra.mxu0 %v1626
    %1656 = vmatprep.subr.mxu0 %v1625
    %1657 = vmatpush1.xpose.msra.mxu0 %v1624
    %1658 = vmatprep.subr.mxu0 %v1623
    %1659 = vmatpush1.xpose.msra.mxu0 %v1622
    %1660 = vmatprep.subr.mxu0 %v1621
    %1661 = vmatpush1.xpose.msra.mxu0 %v1620
    %1662 = vmatprep.subr.mxu0 %v1619
    %1663 = vmatpush1.xpose.msra.mxu0 %v1618
    %1664 = vmatprep.subr.mxu0 %v1617
    %1665 = vmatpush1.xpose.msra.mxu0 %v1616
    %1666 = vmatprep.subr.mxu0 %v1615
    %1667 = vmatpush1.xpose.msra.mxu0 %v1614
    %1668 = vmatprep.subr.mxu0 %v1613
    %1669 = vmatpush1.xpose.msra.mxu0 %v1612
    %1670 = vmatprep.subr.mxu0 %v1611
    %1671 = vmatpush1.xpose.msra.mxu0 %v1610
    %1672 = vmatprep.subr.mxu0 %v1609
    %1673 = vmatpush1.xpose.msra.mxu0 %v1608
    %1674 = vmatprep.subr.mxu0 %v1607
    %1675 = vmatpush1.xpose.msra.mxu0 %v1606
    %1676 = vmatprep.subr.mxu0 %v1605
    %1677 = vmatpush1.xpose.msra.mxu0 %v1604
    %1678 = vmatprep.subr.mxu0 %v1603
    %1679 = vmatpush1.xpose.msra.mxu0 %v1602
    %1680 = vmatprep.subr.mxu0 %v1601
    %1681 = vmatpush1.xpose.msra.mxu0 %v1600
    %1682 = vmatprep.subr.mxu0 %v1599
    %1683 = vmatpush1.xpose.msra.mxu0 %v1598
    %1684 = vmatprep.subr.mxu0 0.0
    %1685 = vmatpush2.xpose.msra.mxu0 0.0
    %1686 = vmatprep.subr.mxu0 0.0
    %1687 = vmatpush2.xpose.msra.mxu0 0.0
    %1688 = vmatprep.subr.mxu0 0.0
    %1689 = vmatpush2.xpose.msra.mxu0 0.0
    %1690 = vmatprep.subr.mxu0 0.0
    %1691 = vmatpush2.xpose.msra.mxu0 0.0
    %1692 = vmatprep.subr.mxu0 0.0
    %1693 = vmatpush2.xpose.msra.mxu0 0.0
    %1694 = vmatprep.subr.mxu0 0.0
    %1695 = vmatpush2.xpose.msra.mxu0 0.0
    %1696 = vmatprep.subr.mxu0 0.0
    %1697 = vmatpush2.xpose.msra.mxu0 0.0
    %1698 = vmatprep.subr.mxu0 0.0
    %1699 = vmatpush2.xpose.msra.mxu0 0.0
    %1700 = vmatprep.subr.mxu0 0.0
    %1701 = vmatpush2.xpose.msra.mxu0 0.0
    %1702 = vmatprep.subr.mxu0 0.0
    %1703 = vmatpush2.xpose.msra.mxu0 0.0
    %1704 = vmatprep.subr.mxu0 0.0
    %1705 = vmatpush2.xpose.msra.mxu0 0.0
    %1706 = vmatprep.subr.mxu0 0.0
    %1707 = vmatpush2.xpose.msra.mxu0 0.0
    %1708 = vmatprep.subr.mxu0 0.0
    %1709 = vmatpush2.xpose.msra.mxu0 0.0
    %1710 = vmatprep.subr.mxu0 0.0
    %1711 = vmatpush2.xpose.msra.mxu0 0.0
    %1712 = vmatprep.subr.mxu0 0.0
    %1713 = vmatpush2.xpose.msra.mxu0 0.0
    %1714 = vmatprep.subr.mxu0 0.0
    %1715 = vmatpush2.xpose.msra.mxu0 0.0
    %1716 = vmatprep.mubr.f32.mxu0 %v1649
    %1717 = vmatmul.mubr.f32.gmra.mxu0 %v1645
    %v1718 = vpop.f32.mrf.mxu0
    %v1719 = vadd.f32 %v1640, %v1718
    %v1720 = vpop.f32.mrf.mxu0
    %1721 = vdwg.mxu0
    %1722 = vst [vmem:[#allocation8] sm:$0x1] %v1719
    // Predicated region
    $region46: #{tpu_custom_call.1} parent=1 // pred_check
      _
    $region47: #{tpu_custom_call.1} parent=1 // pred_check_branch
      %1724 = sbr.rel (0) target = $region49
    $region48: #{tpu_custom_call.1} parent=1 // pred_region
      %s1726 = ssub.s32 16, 16
      %1727 = vsyncadd [#allocation5], %s1726
      %s1729 = sshll.u32 [#allocation8], 4
      %s1730 = int_to_ptr.vmem [resolvable:$true] %s1729
      %1732 = dma.vmem_to_hbm [thread:$0]  %s1730, 16, %s9, [#allocation5]
    $region49: #{tpu_custom_call.1} parent=1 // pred_fallthru
      _
    // Predicated region
    $region50: #{tpu_custom_call.1} parent=1 // pred_check
      _
    $region51: #{tpu_custom_call.1} parent=1 // pred_check_branch
      %1734 = sbr.rel (0) target = $region53
    $region52: #{tpu_custom_call.1} parent=1 // pred_region
      %1735 = dma.done [#allocation5], 16
    $region53: #{tpu_custom_call.1} parent=1 // pred_fallthru
      _
    %1736 = vsyncpa [#allocation4], 1
    %1737 = vsyncpa [#allocation7], 1
    %1738 = vsyncpa [#allocation5], 1

</llo_original>
